<compile_context>
chip_gen: v7x
topology: tpu7x:2x2x1
jax: 0.10.0
libtpu: 0.0.40
codegen_flags: <defaults>
</compile_context>

<pallas_src>
import functools

import jax
import jax.numpy as jnp
from jax.experimental import pallas as pl
from jax.experimental.pallas import tpu as pltpu


# ----------------------------- fused Pallas kernel -------------------------- #

def _basic_block_kernel(x_ref, w1_ref, w2_ref, bn_ref, mask_ref,
                        out_ref, pad_ref, *, H, W):
    """Fused _BasicBlockQ forward for one image (stride=1, identity residual).

    Layout: channels on sublanes, flattened spatial H*W on lanes.  Each 3x3 conv
    is 9 accumulating (C,C)@(C,HW) bf16 matmuls (f32 accumulation); the taps are
    lane-shifted slices of a zero-haloed bf16 row slab in VMEM, with left/right
    edge masks for the kw=0/2 taps and the halo covering kh=0/2 row overruns.
    """
    C = x_ref.shape[1]
    HW = H * W
    OFF = (pad_ref.shape[1] - HW) // 2          # lane-aligned halo width (>= W+1)

    not_left = mask_ref[0:1, :]                 # 0 where w == 0      (kw == 0 taps)
    not_right = mask_ref[1:2, :]                # 0 where w == W - 1  (kw == 2 taps)

    # Zero only the halo, once per invocation; the interior is fully
    # overwritten before each conv.
    zero_halo = jnp.zeros((C, OFF), pad_ref.dtype)
    pad_ref[:, :OFF] = zero_halo
    pad_ref[:, OFF + HW:] = zero_halo

    def conv3x3(w_ref):                         # taps read from pad_ref -> (C, HW) f32
        acc = None
        for kh in range(3):
            for kw in range(3):
                start = OFF + (kh - 1) * W + (kw - 1)
                tap = pad_ref[:, start:start + HW]          # bf16, lane-shifted view
                if kw == 0:
                    tap = tap * not_left
                elif kw == 2:
                    tap = tap * not_right
                part = jnp.dot(w_ref[kh * 3 + kw], tap,
                               preferred_element_type=jnp.float32)
                acc = part if acc is None else acc + part
        return acc

    x2d = x_ref[0]                              # (C, HW) f32 residual, resident in VMEM

    # ---- conv1 -> BN1 -> ReLU ----
    # TODO(synk): qf.product_ActQ() (unsigned activation fake-quant) treated as identity.
    pad_ref[:, OFF:OFF + HW] = x2d.astype(pad_ref.dtype)
    y = conv3x3(w1_ref)
    y = jnp.maximum(y * bn_ref[:, 0:1] + bn_ref[:, 1:2], 0.0)

    # ---- conv2 -> BN2 ----
    # TODO(synk): qf.product_ActQ(signed=True) treated as identity.
    # The conv1 output lives in the bf16 slab (doubles as the "y scratch").
    pad_ref[:, OFF:OFF + HW] = y.astype(pad_ref.dtype)
    y = conv3x3(w2_ref)
    y = y * bn_ref[:, 2:3] + bn_ref[:, 3:4]

    # ---- residual add + ReLU ----
    # TODO(synk): out_actq (qf.product_ActQ()) treated as identity.
    out_ref[0] = jnp.maximum(y + x2d, 0.0).astype(out_ref.dtype)


# ------------------------------ module wrapper ------------------------------ #

def _fold_bn(gamma, beta, running_mean, running_var, eps=1e-5):
    scale = gamma / jnp.sqrt(running_var + eps)
    bias = beta - running_mean * scale
    return scale, bias


@jax.jit
def basic_block_q_forward(x_nchw, w1_oihw, w2_oihw,
                          bn1_g, bn1_b, bn1_m, bn1_v,
                          bn2_g, bn2_b, bn2_m, bn2_v):
    """_BasicBlockQ.forward with stride=1, downsample=None (identity residual)."""
    N, C, H, W = x_nchw.shape
    assert w1_oihw.shape == (C, C, 3, 3) and w2_oihw.shape == (C, C, 3, 3), \
        "identity residual requires inplanes == planes (stride=1, downsample=None)"
    HW = H * W

    x_flat = x_nchw.reshape(N, C, HW)              # spatial flattened onto lanes

    def prep_w(w_oihw):                            # OIHW -> (kh*3+kw, O, I) bf16 per-tap
        return jnp.transpose(w_oihw, (2, 3, 0, 1)).reshape(9, C, C).astype(jnp.bfloat16)

    w1t = prep_w(w1_oihw)
    w2t = prep_w(w2_oihw)

    s1, b1 = _fold_bn(bn1_g, bn1_b, bn1_m, bn1_v)
    s2, b2 = _fold_bn(bn2_g, bn2_b, bn2_m, bn2_v)
    bn = jnp.stack([s1, b1, s2, b2], axis=1).astype(jnp.float32)        # (C, 4)

    # Edge masks (1.0 = keep) for the left/right conv taps of the flattened layout.
    col = jnp.arange(HW, dtype=jnp.int32) % W
    edge_mask = jnp.stack([col != 0, col != (W - 1)]).astype(jnp.bfloat16)  # (2, HW)

    pad_off = ((W + 1 + 127) // 128) * 128         # lane-aligned halo width
    padlen = HW + 2 * pad_off

    kernel = functools.partial(_basic_block_kernel, H=H, W=W)
    out_flat = pl.pallas_call(
        kernel,
        out_shape=jax.ShapeDtypeStruct((N, C, HW), x_nchw.dtype),
        grid=(N,),
        in_specs=[
            pl.BlockSpec((1, C, HW), lambda n: (n, 0, 0)),     # x (conv1 input + residual)
            # TODO(synk): on v7x at C>=256, single-buffer these constant operands
            #             (pipeline_mode=pl.Buffered(1)) to reclaim VMEM headroom.
            pl.BlockSpec((9, C, C), lambda n: (0, 0, 0)),      # w1 per-tap (bf16)
            pl.BlockSpec((9, C, C), lambda n: (0, 0, 0)),      # w2 per-tap (bf16)
            pl.BlockSpec((C, 4), lambda n: (0, 0)),            # folded BN [s1 b1 s2 b2]
            pl.BlockSpec((2, HW), lambda n: (0, 0)),           # left/right edge masks
        ],
        out_specs=pl.BlockSpec((1, C, HW), lambda n: (n, 0, 0)),
        scratch_shapes=[
            pltpu.VMEM((C, padlen), jnp.bfloat16),             # zero-haloed bf16 row slab
        ],
        compiler_params=pltpu.CompilerParams(
            dimension_semantics=("parallel",),                 # batch across TCs (v7x)
            vmem_limit_bytes=32 * 1024 * 1024),
    )(x_flat, w1t, w2t, bn, edge_mask)

    return out_flat.reshape(N, C, H, W)


# ----------------------------- params / reference --------------------------- #

def init_basic_block_params(key, inplanes, planes):
    """Deterministic parameter init mirroring the module's __init__ shapes."""
    k1, k2 = jax.random.split(key)
    n = 3 * 3 * planes
    std = (2.0 / n) ** 0.5
    w1_oihw = std * jax.random.normal(k1, (planes, inplanes, 3, 3), jnp.float32)
    w2_oihw = std * jax.random.normal(k2, (planes, planes, 3, 3), jnp.float32)
    c = jnp.arange(planes, dtype=jnp.float32)
    bn1 = (1.0 + 0.05 * c, 0.01 * c, 0.02 * c, 1.0 + 0.03 * c)   # gamma, beta, mean, var
    bn2 = (1.0 - 0.02 * c, -0.01 * c, -0.03 * c, 1.0 + 0.05 * c)
    return dict(w1=w1_oihw, w2=w2_oihw, bn1=bn1, bn2=bn2)


def _reference(x_nchw, w1, w2, bn1, bn2):
    def conv(x, w):
        return jax.lax.conv_general_dilated(
            x, w, (1, 1), ((1, 1), (1, 1)),
            dimension_numbers=("NCHW", "OIHW", "NCHW"))
    s1, b1 = _fold_bn(*bn1)
    s2, b2 = _fold_bn(*bn2)
    out = jnp.maximum(conv(x_nchw, w1) * s1[None, :, None, None]
                      + b1[None, :, None, None], 0.0)
    out = conv(out, w2) * s2[None, :, None, None] + b2[None, :, None, None]
    out = jnp.maximum(out + x_nchw, 0.0)
    return out


if __name__ == "__main__":
    N, C, H, W = 2, 4, 16, 16          # inplanes == planes, stride=1, downsample=None
    key = jax.random.PRNGKey(0)
    kx, kp = jax.random.split(key)
    x = jax.random.normal(kx, (N, C, H, W), jnp.float32)
    params = init_basic_block_params(kp, inplanes=C, planes=C)

    out = basic_block_q_forward(
        x, params["w1"], params["w2"],
        *params["bn1"], *params["bn2"])
    out = jax.block_until_ready(out)

    ref = _reference(x, params["w1"], params["w2"], params["bn1"], params["bn2"])
    assert out.shape == (N, C, H, W)
    # slightly looser tolerance because the MXU inputs are bf16 (f32 accumulation)
    assert jnp.allclose(out, ref, atol=5e-2, rtol=5e-2), \
        float(jnp.max(jnp.abs(out - ref)))
    print("KERNEL_OK")
</pallas_src>

<mosaic_0001>
module attributes {stable_mosaic.version = 11 : i64} {
  func.func @_basic_block_kernel(%arg0: i32, %arg1: memref<1x4x256xf32, #tpu.memory_space<vmem>>, %arg2: memref<9x4x4xbf16, #tpu.memory_space<vmem>>, %arg3: memref<9x4x4xbf16, #tpu.memory_space<vmem>>, %arg4: memref<4x4xf32, #tpu.memory_space<vmem>>, %arg5: memref<2x256xbf16, #tpu.memory_space<vmem>>, %arg6: memref<1x4x256xf32, #tpu.memory_space<vmem>>, %arg7: memref<4x512xbf16, #tpu.memory_space<vmem>>) attributes {dimension_semantics = [#tpu.dimension_semantics<parallel>], iteration_bounds = array<i64: 2>, scalar_prefetch = 0 : i64, scratch_operands = 1 : i64, tpu.core_type = #tpu.core_type<tc>, window_params = [{transform_indices = @transform_0, window_bounds = array<i64: 1, 4, 256>}, {pipeline_mode = #tpu.pipeline_mode<synchronous>, transform_indices = @transform_1, window_bounds = array<i64: 9, 4, 4>}, {pipeline_mode = #tpu.pipeline_mode<synchronous>, transform_indices = @transform_2, window_bounds = array<i64: 9, 4, 4>}, {pipeline_mode = #tpu.pipeline_mode<synchronous>, transform_indices = @transform_3, window_bounds = array<i64: 4, 4>}, {pipeline_mode = #tpu.pipeline_mode<synchronous>, transform_indices = @transform_4, window_bounds = array<i64: 2, 256>}, {transform_indices = @transform_5, window_bounds = array<i64: 1, 4, 256>}]} {
    %c0 = arith.constant 0 : index
    %c0_0 = arith.constant 0 : index
    %0 = vector.load %arg5[%c0, %c0_0] : memref<2x256xbf16, #tpu.memory_space<vmem>>, vector<1x256xbf16>
    %c1 = arith.constant 1 : index
    %c0_1 = arith.constant 0 : index
    %1 = vector.load %arg5[%c1, %c0_1] : memref<2x256xbf16, #tpu.memory_space<vmem>>, vector<1x256xbf16>
    %cst = arith.constant 0.000000e+00 : bf16
    %2 = vector.broadcast %cst : bf16 to vector<4x128xbf16>
    %c0_2 = arith.constant 0 : index
    %c0_3 = arith.constant 0 : index
    %3 = vector.load %arg7[%c0_2, %c0_3] : memref<4x512xbf16, #tpu.memory_space<vmem>>, vector<4x128xbf16>
    tpu.vector_store %arg7[%c0_2, %c0_3], %2 {strides = array<i32>} : memref<4x512xbf16, #tpu.memory_space<vmem>>, vector<4x128xbf16>,
    %c0_4 = arith.constant 0 : index
    %c384 = arith.constant 384 : index
    %4 = vector.load %arg7[%c0_4, %c384] : memref<4x512xbf16, #tpu.memory_space<vmem>>, vector<4x128xbf16>
    tpu.vector_store %arg7[%c0_4, %c384], %2 {strides = array<i32>} : memref<4x512xbf16, #tpu.memory_space<vmem>>, vector<4x128xbf16>,
    %c0_5 = arith.constant 0 : index
    %c0_6 = arith.constant 0 : index
    %c0_7 = arith.constant 0 : index
    %5 = vector.load %arg1[%c0_5, %c0_6, %c0_7] : memref<1x4x256xf32, #tpu.memory_space<vmem>>, vector<1x4x256xf32>
    %6 = vector.shape_cast %5 : vector<1x4x256xf32> to vector<4x256xf32>
    %7 = arith.truncf %6 : vector<4x256xf32> to vector<4x256xbf16>
    %c0_8 = arith.constant 0 : index
    %c128 = arith.constant 128 : index
    %8 = vector.load %arg7[%c0_8, %c128] : memref<4x512xbf16, #tpu.memory_space<vmem>>, vector<4x256xbf16>
    tpu.vector_store %arg7[%c0_8, %c128], %7 {strides = array<i32>} : memref<4x512xbf16, #tpu.memory_space<vmem>>, vector<4x256xbf16>,
    %c0_9 = arith.constant 0 : index
    %c111 = arith.constant 111 : index
    %9 = vector.load %arg7[%c0_9, %c111] : memref<4x512xbf16, #tpu.memory_space<vmem>>, vector<4x256xbf16>
    %10 = vector.broadcast %0 : vector<1x256xbf16> to vector<4x256xbf16>
    %11 = arith.mulf %9, %10 : vector<4x256xbf16>
    %c0_10 = arith.constant 0 : index
    %c0_11 = arith.constant 0 : index
    %c0_12 = arith.constant 0 : index
    %12 = vector.load %arg2[%c0_10, %c0_11, %c0_12] : memref<9x4x4xbf16, #tpu.memory_space<vmem>>, vector<1x4x4xbf16>
    %13 = vector.shape_cast %12 : vector<1x4x4xbf16> to vector<4x4xbf16>
    %cst_13 = arith.constant dense<0.000000e+00> : vector<4x256xf32>
    %14 = tpu.matmul %13, %11, %cst_13 {dimension_numbers = #tpu.dot_dimension_numbers<[1], [0], [0], [1], [0, 0, 1, 1], [], []>} : vector<4x4xbf16>, vector<4x256xbf16>, vector<4x256xf32> -> vector<4x256xf32>
    %c0_14 = arith.constant 0 : index
    %c112 = arith.constant 112 : index
    %15 = vector.load %arg7[%c0_14, %c112] : memref<4x512xbf16, #tpu.memory_space<vmem>>, vector<4x256xbf16>
    %c1_15 = arith.constant 1 : index
    %c0_16 = arith.constant 0 : index
    %c0_17 = arith.constant 0 : index
    %16 = vector.load %arg2[%c1_15, %c0_16, %c0_17] : memref<9x4x4xbf16, #tpu.memory_space<vmem>>, vector<1x4x4xbf16>
    %17 = vector.shape_cast %16 : vector<1x4x4xbf16> to vector<4x4xbf16>
    %cst_18 = arith.constant dense<0.000000e+00> : vector<4x256xf32>
    %18 = tpu.matmul %17, %15, %cst_18 {dimension_numbers = #tpu.dot_dimension_numbers<[1], [0], [0], [1], [0, 0, 1, 1], [], []>} : vector<4x4xbf16>, vector<4x256xbf16>, vector<4x256xf32> -> vector<4x256xf32>
    %19 = arith.addf %14, %18 : vector<4x256xf32>
    %c0_19 = arith.constant 0 : index
    %c113 = arith.constant 113 : index
    %20 = vector.load %arg7[%c0_19, %c113] : memref<4x512xbf16, #tpu.memory_space<vmem>>, vector<4x256xbf16>
    %21 = vector.broadcast %1 : vector<1x256xbf16> to vector<4x256xbf16>
    %22 = arith.mulf %20, %21 : vector<4x256xbf16>
    %c2 = arith.constant 2 : index
    %c0_20 = arith.constant 0 : index
    %c0_21 = arith.constant 0 : index
    %23 = vector.load %arg2[%c2, %c0_20, %c0_21] : memref<9x4x4xbf16, #tpu.memory_space<vmem>>, vector<1x4x4xbf16>
    %24 = vector.shape_cast %23 : vector<1x4x4xbf16> to vector<4x4xbf16>
    %cst_22 = arith.constant dense<0.000000e+00> : vector<4x256xf32>
    %25 = tpu.matmul %24, %22, %cst_22 {dimension_numbers = #tpu.dot_dimension_numbers<[1], [0], [0], [1], [0, 0, 1, 1], [], []>} : vector<4x4xbf16>, vector<4x256xbf16>, vector<4x256xf32> -> vector<4x256xf32>
    %26 = arith.addf %19, %25 : vector<4x256xf32>
    %c0_23 = arith.constant 0 : index
    %c127 = arith.constant 127 : index
    %27 = vector.load %arg7[%c0_23, %c127] : memref<4x512xbf16, #tpu.memory_space<vmem>>, vector<4x256xbf16>
    %28 = vector.broadcast %0 : vector<1x256xbf16> to vector<4x256xbf16>
    %29 = arith.mulf %27, %28 : vector<4x256xbf16>
    %c3 = arith.constant 3 : index
    %c0_24 = arith.constant 0 : index
    %c0_25 = arith.constant 0 : index
    %30 = vector.load %arg2[%c3, %c0_24, %c0_25] : memref<9x4x4xbf16, #tpu.memory_space<vmem>>, vector<1x4x4xbf16>
    %31 = vector.shape_cast %30 : vector<1x4x4xbf16> to vector<4x4xbf16>
    %cst_26 = arith.constant dense<0.000000e+00> : vector<4x256xf32>
    %32 = tpu.matmul %31, %29, %cst_26 {dimension_numbers = #tpu.dot_dimension_numbers<[1], [0], [0], [1], [0, 0, 1, 1], [], []>} : vector<4x4xbf16>, vector<4x256xbf16>, vector<4x256xf32> -> vector<4x256xf32>
    %33 = arith.addf %26, %32 : vector<4x256xf32>
    %c0_27 = arith.constant 0 : index
    %c128_28 = arith.constant 128 : index
    %34 = vector.load %arg7[%c0_27, %c128_28] : memref<4x512xbf16, #tpu.memory_space<vmem>>, vector<4x256xbf16>
    %c4 = arith.constant 4 : index
    %c0_29 = arith.constant 0 : index
    %c0_30 = arith.constant 0 : index
    %35 = vector.load %arg2[%c4, %c0_29, %c0_30] : memref<9x4x4xbf16, #tpu.memory_space<vmem>>, vector<1x4x4xbf16>
    %36 = vector.shape_cast %35 : vector<1x4x4xbf16> to vector<4x4xbf16>
    %cst_31 = arith.constant dense<0.000000e+00> : vector<4x256xf32>
    %37 = tpu.matmul %36, %34, %cst_31 {dimension_numbers = #tpu.dot_dimension_numbers<[1], [0], [0], [1], [0, 0, 1, 1], [], []>} : vector<4x4xbf16>, vector<4x256xbf16>, vector<4x256xf32> -> vector<4x256xf32>
    %38 = arith.addf %33, %37 : vector<4x256xf32>
    %c0_32 = arith.constant 0 : index
    %c129 = arith.constant 129 : index
    %39 = vector.load %arg7[%c0_32, %c129] : memref<4x512xbf16, #tpu.memory_space<vmem>>, vector<4x256xbf16>
    %40 = vector.broadcast %1 : vector<1x256xbf16> to vector<4x256xbf16>
    %41 = arith.mulf %39, %40 : vector<4x256xbf16>
    %c5 = arith.constant 5 : index
    %c0_33 = arith.constant 0 : index
    %c0_34 = arith.constant 0 : index
    %42 = vector.load %arg2[%c5, %c0_33, %c0_34] : memref<9x4x4xbf16, #tpu.memory_space<vmem>>, vector<1x4x4xbf16>
    %43 = vector.shape_cast %42 : vector<1x4x4xbf16> to vector<4x4xbf16>
    %cst_35 = arith.constant dense<0.000000e+00> : vector<4x256xf32>
    %44 = tpu.matmul %43, %41, %cst_35 {dimension_numbers = #tpu.dot_dimension_numbers<[1], [0], [0], [1], [0, 0, 1, 1], [], []>} : vector<4x4xbf16>, vector<4x256xbf16>, vector<4x256xf32> -> vector<4x256xf32>
    %45 = arith.addf %38, %44 : vector<4x256xf32>
    %c0_36 = arith.constant 0 : index
    %c143 = arith.constant 143 : index
    %46 = vector.load %arg7[%c0_36, %c143] : memref<4x512xbf16, #tpu.memory_space<vmem>>, vector<4x256xbf16>
    %47 = vector.broadcast %0 : vector<1x256xbf16> to vector<4x256xbf16>
    %48 = arith.mulf %46, %47 : vector<4x256xbf16>
    %c6 = arith.constant 6 : index
    %c0_37 = arith.constant 0 : index
    %c0_38 = arith.constant 0 : index
    %49 = vector.load %arg2[%c6, %c0_37, %c0_38] : memref<9x4x4xbf16, #tpu.memory_space<vmem>>, vector<1x4x4xbf16>
    %50 = vector.shape_cast %49 : vector<1x4x4xbf16> to vector<4x4xbf16>
    %cst_39 = arith.constant dense<0.000000e+00> : vector<4x256xf32>
    %51 = tpu.matmul %50, %48, %cst_39 {dimension_numbers = #tpu.dot_dimension_numbers<[1], [0], [0], [1], [0, 0, 1, 1], [], []>} : vector<4x4xbf16>, vector<4x256xbf16>, vector<4x256xf32> -> vector<4x256xf32>
    %52 = arith.addf %45, %51 : vector<4x256xf32>
    %c0_40 = arith.constant 0 : index
    %c144 = arith.constant 144 : index
    %53 = vector.load %arg7[%c0_40, %c144] : memref<4x512xbf16, #tpu.memory_space<vmem>>, vector<4x256xbf16>
    %c7 = arith.constant 7 : index
    %c0_41 = arith.constant 0 : index
    %c0_42 = arith.constant 0 : index
    %54 = vector.load %arg2[%c7, %c0_41, %c0_42] : memref<9x4x4xbf16, #tpu.memory_space<vmem>>, vector<1x4x4xbf16>
    %55 = vector.shape_cast %54 : vector<1x4x4xbf16> to vector<4x4xbf16>
    %cst_43 = arith.constant dense<0.000000e+00> : vector<4x256xf32>
    %56 = tpu.matmul %55, %53, %cst_43 {dimension_numbers = #tpu.dot_dimension_numbers<[1], [0], [0], [1], [0, 0, 1, 1], [], []>} : vector<4x4xbf16>, vector<4x256xbf16>, vector<4x256xf32> -> vector<4x256xf32>
    %57 = arith.addf %52, %56 : vector<4x256xf32>
    %c0_44 = arith.constant 0 : index
    %c145 = arith.constant 145 : index
    %58 = vector.load %arg7[%c0_44, %c145] : memref<4x512xbf16, #tpu.memory_space<vmem>>, vector<4x256xbf16>
    %59 = vector.broadcast %1 : vector<1x256xbf16> to vector<4x256xbf16>
    %60 = arith.mulf %58, %59 : vector<4x256xbf16>
    %c8 = arith.constant 8 : index
    %c0_45 = arith.constant 0 : index
    %c0_46 = arith.constant 0 : index
    %61 = vector.load %arg2[%c8, %c0_45, %c0_46] : memref<9x4x4xbf16, #tpu.memory_space<vmem>>, vector<1x4x4xbf16>
    %62 = vector.shape_cast %61 : vector<1x4x4xbf16> to vector<4x4xbf16>
    %cst_47 = arith.constant dense<0.000000e+00> : vector<4x256xf32>
    %63 = tpu.matmul %62, %60, %cst_47 {dimension_numbers = #tpu.dot_dimension_numbers<[1], [0], [0], [1], [0, 0, 1, 1], [], []>} : vector<4x4xbf16>, vector<4x256xbf16>, vector<4x256xf32> -> vector<4x256xf32>
    %64 = arith.addf %57, %63 : vector<4x256xf32>
    %c0_48 = arith.constant 0 : index
    %c0_49 = arith.constant 0 : index
    %65 = vector.load %arg4[%c0_48, %c0_49] : memref<4x4xf32, #tpu.memory_space<vmem>>, vector<4x1xf32>
    %66 = vector.broadcast %65 : vector<4x1xf32> to vector<4x256xf32>
    %67 = arith.mulf %64, %66 : vector<4x256xf32>
    %c0_50 = arith.constant 0 : index
    %c1_51 = arith.constant 1 : index
    %68 = vector.load %arg4[%c0_50, %c1_51] : memref<4x4xf32, #tpu.memory_space<vmem>>, vector<4x1xf32>
    %69 = vector.broadcast %68 : vector<4x1xf32> to vector<4x256xf32>
    %70 = arith.addf %67, %69 : vector<4x256xf32>
    %cst_52 = arith.constant 0.000000e+00 : f32
    %71 = vector.broadcast %cst_52 : f32 to vector<4x256xf32>
    %72 = arith.maximumf %70, %71 : vector<4x256xf32>
    %73 = arith.truncf %72 : vector<4x256xf32> to vector<4x256xbf16>
    %c0_53 = arith.constant 0 : index
    %c128_54 = arith.constant 128 : index
    %74 = vector.load %arg7[%c0_53, %c128_54] : memref<4x512xbf16, #tpu.memory_space<vmem>>, vector<4x256xbf16>
    tpu.vector_store %arg7[%c0_53, %c128_54], %73 {strides = array<i32>} : memref<4x512xbf16, #tpu.memory_space<vmem>>, vector<4x256xbf16>,
    %c0_55 = arith.constant 0 : index
    %c111_56 = arith.constant 111 : index
    %75 = vector.load %arg7[%c0_55, %c111_56] : memref<4x512xbf16, #tpu.memory_space<vmem>>, vector<4x256xbf16>
    %76 = vector.broadcast %0 : vector<1x256xbf16> to vector<4x256xbf16>
    %77 = arith.mulf %75, %76 : vector<4x256xbf16>
    %c0_57 = arith.constant 0 : index
    %c0_58 = arith.constant 0 : index
    %c0_59 = arith.constant 0 : index
    %78 = vector.load %arg3[%c0_57, %c0_58, %c0_59] : memref<9x4x4xbf16, #tpu.memory_space<vmem>>, vector<1x4x4xbf16>
    %79 = vector.shape_cast %78 : vector<1x4x4xbf16> to vector<4x4xbf16>
    %cst_60 = arith.constant dense<0.000000e+00> : vector<4x256xf32>
    %80 = tpu.matmul %79, %77, %cst_60 {dimension_numbers = #tpu.dot_dimension_numbers<[1], [0], [0], [1], [0, 0, 1, 1], [], []>} : vector<4x4xbf16>, vector<4x256xbf16>, vector<4x256xf32> -> vector<4x256xf32>
    %c0_61 = arith.constant 0 : index
    %c112_62 = arith.constant 112 : index
    %81 = vector.load %arg7[%c0_61, %c112_62] : memref<4x512xbf16, #tpu.memory_space<vmem>>, vector<4x256xbf16>
    %c1_63 = arith.constant 1 : index
    %c0_64 = arith.constant 0 : index
    %c0_65 = arith.constant 0 : index
    %82 = vector.load %arg3[%c1_63, %c0_64, %c0_65] : memref<9x4x4xbf16, #tpu.memory_space<vmem>>, vector<1x4x4xbf16>
    %83 = vector.shape_cast %82 : vector<1x4x4xbf16> to vector<4x4xbf16>
    %cst_66 = arith.constant dense<0.000000e+00> : vector<4x256xf32>
    %84 = tpu.matmul %83, %81, %cst_66 {dimension_numbers = #tpu.dot_dimension_numbers<[1], [0], [0], [1], [0, 0, 1, 1], [], []>} : vector<4x4xbf16>, vector<4x256xbf16>, vector<4x256xf32> -> vector<4x256xf32>
    %85 = arith.addf %80, %84 : vector<4x256xf32>
    %c0_67 = arith.constant 0 : index
    %c113_68 = arith.constant 113 : index
    %86 = vector.load %arg7[%c0_67, %c113_68] : memref<4x512xbf16, #tpu.memory_space<vmem>>, vector<4x256xbf16>
    %87 = vector.broadcast %1 : vector<1x256xbf16> to vector<4x256xbf16>
    %88 = arith.mulf %86, %87 : vector<4x256xbf16>
    %c2_69 = arith.constant 2 : index
    %c0_70 = arith.constant 0 : index
    %c0_71 = arith.constant 0 : index
    %89 = vector.load %arg3[%c2_69, %c0_70, %c0_71] : memref<9x4x4xbf16, #tpu.memory_space<vmem>>, vector<1x4x4xbf16>
    %90 = vector.shape_cast %89 : vector<1x4x4xbf16> to vector<4x4xbf16>
    %cst_72 = arith.constant dense<0.000000e+00> : vector<4x256xf32>
    %91 = tpu.matmul %90, %88, %cst_72 {dimension_numbers = #tpu.dot_dimension_numbers<[1], [0], [0], [1], [0, 0, 1, 1], [], []>} : vector<4x4xbf16>, vector<4x256xbf16>, vector<4x256xf32> -> vector<4x256xf32>
    %92 = arith.addf %85, %91 : vector<4x256xf32>
    %c0_73 = arith.constant 0 : index
    %c127_74 = arith.constant 127 : index
    %93 = vector.load %arg7[%c0_73, %c127_74] : memref<4x512xbf16, #tpu.memory_space<vmem>>, vector<4x256xbf16>
    %94 = vector.broadcast %0 : vector<1x256xbf16> to vector<4x256xbf16>
    %95 = arith.mulf %93, %94 : vector<4x256xbf16>
    %c3_75 = arith.constant 3 : index
    %c0_76 = arith.constant 0 : index
    %c0_77 = arith.constant 0 : index
    %96 = vector.load %arg3[%c3_75, %c0_76, %c0_77] : memref<9x4x4xbf16, #tpu.memory_space<vmem>>, vector<1x4x4xbf16>
    %97 = vector.shape_cast %96 : vector<1x4x4xbf16> to vector<4x4xbf16>
    %cst_78 = arith.constant dense<0.000000e+00> : vector<4x256xf32>
    %98 = tpu.matmul %97, %95, %cst_78 {dimension_numbers = #tpu.dot_dimension_numbers<[1], [0], [0], [1], [0, 0, 1, 1], [], []>} : vector<4x4xbf16>, vector<4x256xbf16>, vector<4x256xf32> -> vector<4x256xf32>
    %99 = arith.addf %92, %98 : vector<4x256xf32>
    %c0_79 = arith.constant 0 : index
    %c128_80 = arith.constant 128 : index
    %100 = vector.load %arg7[%c0_79, %c128_80] : memref<4x512xbf16, #tpu.memory_space<vmem>>, vector<4x256xbf16>
    %c4_81 = arith.constant 4 : index
    %c0_82 = arith.constant 0 : index
    %c0_83 = arith.constant 0 : index
    %101 = vector.load %arg3[%c4_81, %c0_82, %c0_83] : memref<9x4x4xbf16, #tpu.memory_space<vmem>>, vector<1x4x4xbf16>
    %102 = vector.shape_cast %101 : vector<1x4x4xbf16> to vector<4x4xbf16>
    %cst_84 = arith.constant dense<0.000000e+00> : vector<4x256xf32>
    %103 = tpu.matmul %102, %100, %cst_84 {dimension_numbers = #tpu.dot_dimension_numbers<[1], [0], [0], [1], [0, 0, 1, 1], [], []>} : vector<4x4xbf16>, vector<4x256xbf16>, vector<4x256xf32> -> vector<4x256xf32>
    %104 = arith.addf %99, %103 : vector<4x256xf32>
    %c0_85 = arith.constant 0 : index
    %c129_86 = arith.constant 129 : index
    %105 = vector.load %arg7[%c0_85, %c129_86] : memref<4x512xbf16, #tpu.memory_space<vmem>>, vector<4x256xbf16>
    %106 = vector.broadcast %1 : vector<1x256xbf16> to vector<4x256xbf16>
    %107 = arith.mulf %105, %106 : vector<4x256xbf16>
    %c5_87 = arith.constant 5 : index
    %c0_88 = arith.constant 0 : index
    %c0_89 = arith.constant 0 : index
    %108 = vector.load %arg3[%c5_87, %c0_88, %c0_89] : memref<9x4x4xbf16, #tpu.memory_space<vmem>>, vector<1x4x4xbf16>
    %109 = vector.shape_cast %108 : vector<1x4x4xbf16> to vector<4x4xbf16>
    %cst_90 = arith.constant dense<0.000000e+00> : vector<4x256xf32>
    %110 = tpu.matmul %109, %107, %cst_90 {dimension_numbers = #tpu.dot_dimension_numbers<[1], [0], [0], [1], [0, 0, 1, 1], [], []>} : vector<4x4xbf16>, vector<4x256xbf16>, vector<4x256xf32> -> vector<4x256xf32>
    %111 = arith.addf %104, %110 : vector<4x256xf32>
    %c0_91 = arith.constant 0 : index
    %c143_92 = arith.constant 143 : index
    %112 = vector.load %arg7[%c0_91, %c143_92] : memref<4x512xbf16, #tpu.memory_space<vmem>>, vector<4x256xbf16>
    %113 = vector.broadcast %0 : vector<1x256xbf16> to vector<4x256xbf16>
    %114 = arith.mulf %112, %113 : vector<4x256xbf16>
    %c6_93 = arith.constant 6 : index
    %c0_94 = arith.constant 0 : index
    %c0_95 = arith.constant 0 : index
    %115 = vector.load %arg3[%c6_93, %c0_94, %c0_95] : memref<9x4x4xbf16, #tpu.memory_space<vmem>>, vector<1x4x4xbf16>
    %116 = vector.shape_cast %115 : vector<1x4x4xbf16> to vector<4x4xbf16>
    %cst_96 = arith.constant dense<0.000000e+00> : vector<4x256xf32>
    %117 = tpu.matmul %116, %114, %cst_96 {dimension_numbers = #tpu.dot_dimension_numbers<[1], [0], [0], [1], [0, 0, 1, 1], [], []>} : vector<4x4xbf16>, vector<4x256xbf16>, vector<4x256xf32> -> vector<4x256xf32>
    %118 = arith.addf %111, %117 : vector<4x256xf32>
    %c0_97 = arith.constant 0 : index
    %c144_98 = arith.constant 144 : index
    %119 = vector.load %arg7[%c0_97, %c144_98] : memref<4x512xbf16, #tpu.memory_space<vmem>>, vector<4x256xbf16>
    %c7_99 = arith.constant 7 : index
    %c0_100 = arith.constant 0 : index
    %c0_101 = arith.constant 0 : index
    %120 = vector.load %arg3[%c7_99, %c0_100, %c0_101] : memref<9x4x4xbf16, #tpu.memory_space<vmem>>, vector<1x4x4xbf16>
    %121 = vector.shape_cast %120 : vector<1x4x4xbf16> to vector<4x4xbf16>
    %cst_102 = arith.constant dense<0.000000e+00> : vector<4x256xf32>
    %122 = tpu.matmul %121, %119, %cst_102 {dimension_numbers = #tpu.dot_dimension_numbers<[1], [0], [0], [1], [0, 0, 1, 1], [], []>} : vector<4x4xbf16>, vector<4x256xbf16>, vector<4x256xf32> -> vector<4x256xf32>
    %123 = arith.addf %118, %122 : vector<4x256xf32>
    %c0_103 = arith.constant 0 : index
    %c145_104 = arith.constant 145 : index
    %124 = vector.load %arg7[%c0_103, %c145_104] : memref<4x512xbf16, #tpu.memory_space<vmem>>, vector<4x256xbf16>
    %125 = vector.broadcast %1 : vector<1x256xbf16> to vector<4x256xbf16>
    %126 = arith.mulf %124, %125 : vector<4x256xbf16>
    %c8_105 = arith.constant 8 : index
    %c0_106 = arith.constant 0 : index
    %c0_107 = arith.constant 0 : index
    %127 = vector.load %arg3[%c8_105, %c0_106, %c0_107] : memref<9x4x4xbf16, #tpu.memory_space<vmem>>, vector<1x4x4xbf16>
    %128 = vector.shape_cast %127 : vector<1x4x4xbf16> to vector<4x4xbf16>
    %cst_108 = arith.constant dense<0.000000e+00> : vector<4x256xf32>
    %129 = tpu.matmul %128, %126, %cst_108 {dimension_numbers = #tpu.dot_dimension_numbers<[1], [0], [0], [1], [0, 0, 1, 1], [], []>} : vector<4x4xbf16>, vector<4x256xbf16>, vector<4x256xf32> -> vector<4x256xf32>
    %130 = arith.addf %123, %129 : vector<4x256xf32>
    %c0_109 = arith.constant 0 : index
    %c2_110 = arith.constant 2 : index
    %131 = vector.load %arg4[%c0_109, %c2_110] : memref<4x4xf32, #tpu.memory_space<vmem>>, vector<4x1xf32>
    %132 = vector.broadcast %131 : vector<4x1xf32> to vector<4x256xf32>
    %133 = arith.mulf %130, %132 : vector<4x256xf32>
    %c0_111 = arith.constant 0 : index
    %c3_112 = arith.constant 3 : index
    %134 = vector.load %arg4[%c0_111, %c3_112] : memref<4x4xf32, #tpu.memory_space<vmem>>, vector<4x1xf32>
    %135 = vector.broadcast %134 : vector<4x1xf32> to vector<4x256xf32>
    %136 = arith.addf %133, %135 : vector<4x256xf32>
    %137 = arith.addf %136, %6 : vector<4x256xf32>
    %cst_113 = arith.constant 0.000000e+00 : f32
    %138 = vector.broadcast %cst_113 : f32 to vector<4x256xf32>
    %139 = arith.maximumf %137, %138 : vector<4x256xf32>
    %c0_114 = arith.constant 0 : index
    %c0_115 = arith.constant 0 : index
    %c0_116 = arith.constant 0 : index
    %140 = vector.load %arg6[%c0_114, %c0_115, %c0_116] : memref<1x4x256xf32, #tpu.memory_space<vmem>>, vector<1x4x256xf32>
    %141 = vector.shape_cast %140 : vector<1x4x256xf32> to vector<4x256xf32>
    %142 = vector.shape_cast %139 : vector<4x256xf32> to vector<1x4x256xf32>
    tpu.vector_store %arg6[%c0_114, %c0_115, %c0_116], %142 {strides = array<i32>} : memref<1x4x256xf32, #tpu.memory_space<vmem>>, vector<1x4x256xf32>,
    return
  }
  func.func @transform_0(%arg0: i32) -> (i32, i32, i32) {
    %c0_i32 = arith.constant 0 : i32
    %c0_i32_0 = arith.constant 0 : i32
    %c0_i32_1 = arith.constant 0 : i32
    return %arg0, %c0_i32, %c0_i32_0 : i32, i32, i32
  }
  func.func @transform_1(%arg0: i32) -> (i32, i32, i32) {
    %c0_i32 = arith.constant 0 : i32
    %c0_i32_0 = arith.constant 0 : i32
    %c0_i32_1 = arith.constant 0 : i32
    %c0_i32_2 = arith.constant 0 : i32
    return %c0_i32, %c0_i32_0, %c0_i32_1 : i32, i32, i32
  }
  func.func @transform_2(%arg0: i32) -> (i32, i32, i32) {
    %c0_i32 = arith.constant 0 : i32
    %c0_i32_0 = arith.constant 0 : i32
    %c0_i32_1 = arith.constant 0 : i32
    %c0_i32_2 = arith.constant 0 : i32
    return %c0_i32, %c0_i32_0, %c0_i32_1 : i32, i32, i32
  }
  func.func @transform_3(%arg0: i32) -> (i32, i32) {
    %c0_i32 = arith.constant 0 : i32
    %c0_i32_0 = arith.constant 0 : i32
    %c0_i32_1 = arith.constant 0 : i32
    return %c0_i32, %c0_i32_0 : i32, i32
  }
  func.func @transform_4(%arg0: i32) -> (i32, i32) {
    %c0_i32 = arith.constant 0 : i32
    %c0_i32_0 = arith.constant 0 : i32
    %c0_i32_1 = arith.constant 0 : i32
    return %c0_i32, %c0_i32_0 : i32, i32
  }
  func.func @transform_5(%arg0: i32) -> (i32, i32, i32) {
    %c0_i32 = arith.constant 0 : i32
    %c0_i32_0 = arith.constant 0 : i32
    %c0_i32_1 = arith.constant 0 : i32
    return %arg0, %c0_i32, %c0_i32_0 : i32, i32, i32
  }
}

</mosaic_0001>

<llo_original>
// kernel: basic_block_q_forward.1
$region0: #{basic_block_q_forward.1}
  #allocation0 [shape = 'u32[]', space=smem, size = 0x4, offset = 0x4, fixed_abs, tag = 'smem constant byte address 0x4 - core index']
  #allocation1 [shape = 'u32[144,128]{1,0:T(1,128)}', space=vmem, size = 0x12000, scoped, tag = 'internal scratch']
  #allocation2 [shape = 'bf16[4,512]{1,0:T(4,128)(2,1)}', space=vmem, size = 0x1000, scoped, tag = 'scratch operand']
  %s0 = inlined_call_operand.vmem [shape: f32[2,4,256], index: 0, kind: input, shape index: {}]
  %s1 = inlined_call_operand.vmem [shape: bf16[9,4,4], index: 1, kind: input, shape index: {}]
  %s2 = inlined_call_operand.vmem [shape: bf16[9,4,4], index: 2, kind: input, shape index: {}]
  %s3 = inlined_call_operand.vmem [shape: f32[4,4], index: 3, kind: input, shape index: {}]
  %s4 = inlined_call_operand.vmem [shape: bf16[2,256], index: 4, kind: input, shape index: {}]
  %s5 = inlined_call_operand.vmem [shape: f32[2,4,256], index: 5, kind: output, shape index: {}]
  %s6 = sld [smem:[#allocation0]]
  $region53: #{basic_block_q_forward.1} parent=0
    _
  %s8 = ssub.s32 1, %s6
  %s9 = scalar_select 0, %s8, %s6
  loop: start=0, step=1, limit=4
  $region2: #{basic_block_q_forward.1} parent=0 // loop_pre_header
    _
  $region3: #{basic_block_q_forward.1} parent=0 // loop_header
    %s11 = sphi 0, %s15
    %p12 = scmp.ge.s32.totalorder %s11, 4
    %s21 = sphi 0, %s23
    %s24 = sphi 0, %s21
    %s25 = sphi 0, %s24
    %s41 = sphi 0, %s25
    %s45 = sphi 0, %s45
    %s47 = sphi 0, %s45
    %s48 = sphi 0, %s47
    %s62 = sphi 0, %s48
    %s66 = sphi 0, %s66
    %s68 = sphi 0, %s66
    %s69 = sphi 0, %s68
    %s83 = sphi 0, %s69
    %s87 = sphi 0, %s87
    %s89 = sphi 0, %s87
    %s90 = sphi 0, %s89
    %s104 = sphi 0, %s90
    %s108 = sphi 0, %s108
    %s110 = sphi 0, %s108
    %s111 = sphi 0, %s110
    %s125 = sphi 0, %s111
    %s131 = sphi 0, %s133
    %s134 = sphi 0, %s131
    %s135 = sphi 0, %s134
    %s151 = sphi 0, %s135
  $region4: #{basic_block_q_forward.1} parent=0 // loop_header_branch
    %14 = sbr.rel (%p12) target = $region8
  $region5: #{basic_block_q_forward.1} parent=0 // loop_body
    %s16 = ssub.s32 %s11, 1
    %s17 = ssub.s32 %s11, 2
    %s18 = sadd.s32 %s11, 1
    %s19 = ssub.s32 %s11, %s18
    %p20 = scmp.eq.s32.totalorder %s19, 0
    %s22 = sadd.s32 %s21, 1
    %s23 = scalar_select %p20, %s21, %s22
    %p26 = pneg %p20
    %p27 = scmp.eq.s32.totalorder %s11, 1
    %p28 = por %p26, %p27
    %p29 = scmp.ne.s32.totalorder %s21, %s24
    %p30 = scmp.eq.s32.totalorder %s11, 0
    %p31 = por %p29, %p30
    %p32 = scmp.ne.s32.totalorder %s21, %s24
    %p33 = scmp.eq.s32.totalorder %s16, 1
    %p34 = por %p32, %p33
    %p35 = scmp.ne.s32.totalorder %s24, %s25
    %p36 = scmp.eq.s32.totalorder %s16, 0
    %p37 = por %p35, %p36
    %p38 = scmp.ne.s32.totalorder %s24, %s25
    %p39 = scmp.eq.s32.totalorder %s17, 1
    %p40 = por %p38, %p39
    %p42 = scmp.ne.s32.totalorder %s25, %s41
    %p43 = scmp.eq.s32.totalorder %s17, 0
    %p44 = por %p42, %p43
    %s46 = sadd.s32 %s45, 1
    %p49 = scmp.eq.s32.totalorder %s11, 1
    %p50 = scmp.ne.s32.totalorder %s45, %s47
    %p51 = scmp.eq.s32.totalorder %s11, 0
    %p52 = por %p50, %p51
    %p53 = scmp.ne.s32.totalorder %s45, %s47
    %p54 = scmp.eq.s32.totalorder %s16, 1
    %p55 = por %p53, %p54
    %p56 = scmp.ne.s32.totalorder %s47, %s48
    %p57 = scmp.eq.s32.totalorder %s16, 0
    %p58 = por %p56, %p57
    %p59 = scmp.ne.s32.totalorder %s47, %s48
    %p60 = scmp.eq.s32.totalorder %s17, 1
    %p61 = por %p59, %p60
    %p63 = scmp.ne.s32.totalorder %s48, %s62
    %p64 = scmp.eq.s32.totalorder %s17, 0
    %p65 = por %p63, %p64
    %s67 = sadd.s32 %s66, 1
    %p70 = scmp.eq.s32.totalorder %s11, 1
    %p71 = scmp.ne.s32.totalorder %s66, %s68
    %p72 = scmp.eq.s32.totalorder %s11, 0
    %p73 = por %p71, %p72
    %p74 = scmp.ne.s32.totalorder %s66, %s68
    %p75 = scmp.eq.s32.totalorder %s16, 1
    %p76 = por %p74, %p75
    %p77 = scmp.ne.s32.totalorder %s68, %s69
    %p78 = scmp.eq.s32.totalorder %s16, 0
    %p79 = por %p77, %p78
    %p80 = scmp.ne.s32.totalorder %s68, %s69
    %p81 = scmp.eq.s32.totalorder %s17, 1
    %p82 = por %p80, %p81
    %p84 = scmp.ne.s32.totalorder %s69, %s83
    %p85 = scmp.eq.s32.totalorder %s17, 0
    %p86 = por %p84, %p85
    %s88 = sadd.s32 %s87, 1
    %p91 = scmp.eq.s32.totalorder %s11, 1
    %p92 = scmp.ne.s32.totalorder %s87, %s89
    %p93 = scmp.eq.s32.totalorder %s11, 0
    %p94 = por %p92, %p93
    %p95 = scmp.ne.s32.totalorder %s87, %s89
    %p96 = scmp.eq.s32.totalorder %s16, 1
    %p97 = por %p95, %p96
    %p98 = scmp.ne.s32.totalorder %s89, %s90
    %p99 = scmp.eq.s32.totalorder %s16, 0
    %p100 = por %p98, %p99
    %p101 = scmp.ne.s32.totalorder %s89, %s90
    %p102 = scmp.eq.s32.totalorder %s17, 1
    %p103 = por %p101, %p102
    %p105 = scmp.ne.s32.totalorder %s90, %s104
    %p106 = scmp.eq.s32.totalorder %s17, 0
    %p107 = por %p105, %p106
    %s109 = sadd.s32 %s108, 1
    %p112 = scmp.eq.s32.totalorder %s11, 1
    %p113 = scmp.ne.s32.totalorder %s108, %s110
    %p114 = scmp.eq.s32.totalorder %s11, 0
    %p115 = por %p113, %p114
    %p116 = scmp.ne.s32.totalorder %s108, %s110
    %p117 = scmp.eq.s32.totalorder %s16, 1
    %p118 = por %p116, %p117
    %p119 = scmp.ne.s32.totalorder %s110, %s111
    %p120 = scmp.eq.s32.totalorder %s16, 0
    %p121 = por %p119, %p120
    %p122 = scmp.ne.s32.totalorder %s110, %s111
    %p123 = scmp.eq.s32.totalorder %s17, 1
    %p124 = por %p122, %p123
    %p126 = scmp.ne.s32.totalorder %s111, %s125
    %p127 = scmp.eq.s32.totalorder %s17, 0
    %p128 = por %p126, %p127
    %s129 = ssub.s32 %s11, %s18
    %p130 = scmp.eq.s32.totalorder %s129, 0
    %s132 = sadd.s32 %s131, 1
    %s133 = scalar_select %p130, %s131, %s132
    %p136 = pneg %p130
    %p137 = scmp.eq.s32.totalorder %s11, 1
    %p138 = por %p136, %p137
    %p139 = scmp.ne.s32.totalorder %s131, %s134
    %p140 = scmp.eq.s32.totalorder %s11, 0
    %p141 = por %p139, %p140
    %p142 = scmp.ne.s32.totalorder %s131, %s134
    %p143 = scmp.eq.s32.totalorder %s16, 1
    %p144 = por %p142, %p143
    %p145 = scmp.ne.s32.totalorder %s134, %s135
    %p146 = scmp.eq.s32.totalorder %s16, 0
    %p147 = por %p145, %p146
    %p148 = scmp.ne.s32.totalorder %s134, %s135
    %p149 = scmp.eq.s32.totalorder %s17, 1
    %p150 = por %p148, %p149
    %p152 = scmp.ne.s32.totalorder %s135, %s151
    %p153 = scmp.eq.s32.totalorder %s17, 0
    %p154 = por %p152, %p153
    %p155 = scmp.le.s32.totalorder 1, %s11
    %p156 = scmp.lt.s32.totalorder %s11, 3
    %p157 = pnand %p155, %p156
    %p158 = pneg %p157
    // Predicated region
    $region9: #{basic_block_q_forward.1} parent=5 // pred_check
      _
    $region10: #{basic_block_q_forward.1} parent=5 // pred_check_branch
      %160 = sbr.rel (%p157) target = $region12
    $region11: #{basic_block_q_forward.1} parent=5 // pred_region
      %s161 = ssub.s32 %s11, 1
      // Predicated region
      $region13: #{basic_block_q_forward.1} parent=11 // pred_check
        %p162 = pneg %p58
      $region14: #{basic_block_q_forward.1} parent=11 // pred_check_branch
        %164 = sbr.rel (%p162) target = $region16
      $region15: #{basic_block_q_forward.1} parent=11 // pred_region
        _
      $region16: #{basic_block_q_forward.1} parent=11 // pred_fallthru
        _
      // Predicated region
      $region17: #{basic_block_q_forward.1} parent=11 // pred_check
        %p165 = pneg %p79
      $region18: #{basic_block_q_forward.1} parent=11 // pred_check_branch
        %167 = sbr.rel (%p165) target = $region20
      $region19: #{basic_block_q_forward.1} parent=11 // pred_region
        _
      $region20: #{basic_block_q_forward.1} parent=11 // pred_fallthru
        _
      // Predicated region
      $region21: #{basic_block_q_forward.1} parent=11 // pred_check
        %p168 = pneg %p100
      $region22: #{basic_block_q_forward.1} parent=11 // pred_check_branch
        %170 = sbr.rel (%p168) target = $region24
      $region23: #{basic_block_q_forward.1} parent=11 // pred_region
        _
      $region24: #{basic_block_q_forward.1} parent=11 // pred_fallthru
        _
      // Predicated region
      $region25: #{basic_block_q_forward.1} parent=11 // pred_check
        %p171 = pneg %p121
      $region26: #{basic_block_q_forward.1} parent=11 // pred_check_branch
        %173 = sbr.rel (%p171) target = $region28
      $region27: #{basic_block_q_forward.1} parent=11 // pred_region
        _
      $region28: #{basic_block_q_forward.1} parent=11 // pred_fallthru
        _
    $region12: #{basic_block_q_forward.1} parent=5 // pred_fallthru
      _
    %p174 = scmp.lt.s32.totalorder %s11, 2
    // Predicated region
    $region29: #{basic_block_q_forward.1} parent=5 // pred_check
      %p175 = pneg %p174
    $region30: #{basic_block_q_forward.1} parent=5 // pred_check_branch
      %177 = sbr.rel (%p175) target = $region32
    $region31: #{basic_block_q_forward.1} parent=5 // pred_region
      // Predicated region
      $region33: #{basic_block_q_forward.1} parent=31 // pred_check
        %p178 = pneg %p31
      $region34: #{basic_block_q_forward.1} parent=31 // pred_check_branch
        %180 = sbr.rel (%p178) target = $region36
      $region35: #{basic_block_q_forward.1} parent=31 // pred_region
        %p181 = scmp.lt.s32.totalorder %s11, 1
        %s182 = scalar_select %p181, %s11, 1
        %s183 = smul.addr %s182, 2
        %s184 = smul.addr %s183, 4
        %s185 = scalar_lea.vmem %s0, %s184
      $region36: #{basic_block_q_forward.1} parent=31 // pred_fallthru
        _
    $region32: #{basic_block_q_forward.1} parent=5 // pred_fallthru
      _
    %p186 = scmp.le.s32.totalorder 1, %s11
    %p187 = scmp.lt.s32.totalorder %s11, 3
    %p188 = pnand %p186, %p187
    %p189 = pneg %p188
    // Predicated region
    $region37: #{basic_block_q_forward.1} parent=5 // pred_check
      _
    $region38: #{basic_block_q_forward.1} parent=5 // pred_check_branch
      %191 = sbr.rel (%p188) target = $region40
    $region39: #{basic_block_q_forward.1} parent=5 // pred_region
      %s192 = ssub.s32 %s11, 1
      %p193 = scmp.lt.s32.totalorder %s16, 1
      %s194 = scalar_select %p193, %s16, 1
      %s195 = smul.addr %s194, 2
      %s196 = smul.addr %s195, 4
      %s197 = scalar_lea.vmem %s0, %s196
      %p198 = pneg %p37
      %p199 = pneg %p34
      %p200 = pneg %p58
      %p201 = pneg %p55
      %p202 = pneg %p79
      %p203 = pneg %p76
      %p204 = pneg %p100
      %p205 = pneg %p97
      %p206 = pneg %p121
      %p207 = pneg %p118
      %p208 = pneg %p147
      %p209 = pneg %p144
      %p210 = scmp.lt.s32.totalorder %s16, 1
      %s211 = scalar_select %p210, %s16, 1
      %s212 = smul.addr %s211, 2
      %s213 = smul.addr %s212, 4
      %s214 = scalar_lea.vmem %s5, %s213
      %p215 = scmp.lt.s32.totalorder %s16, 1
      %s216 = scalar_select %p215, %s16, 1
      %s217 = smul.addr %s216, 2
      %s218 = smul.addr %s217, 4
      %s219 = scalar_lea.vmem %s0, %s218
      %p220 = scmp.lt.s32.totalorder %s16, 1
      %s221 = scalar_select %p220, %s16, 1
      %s222 = smul.addr %s221, 2
      %s223 = smul.addr %s222, 4
      %s224 = scalar_lea.vmem %s5, %s223
      %v226 = vld [vmem:[%s4] sm:$0x3]
      %227 = vst [vmem:[#allocation2] sm:$0x3] 0
      %228 = vst [vmem:[#allocation2 + $0x6] sm:$0x3] 0
      %v229 = vld [vmem:[%s219] sm:$0xff]
      %v231 = vcombine.high %v229, %v229
      %v233 = vpack.c.bf16 %v229, %v229
      %v234 = vpack.c.bf16 %v231, %v231
      %v237 = vcombine.low %v233, %v234
      %v239 = vunpack.c.l.s4 1983009808
      %v240 = vunpack.c.0.s8 %v239
      %v241 = vlaneseq
      %v242 = vshrl.u32 %v241, 7
      %v243 = vsub.s32 %v240, %v242
      %v244 = vrot.slane %v237, %v243
      %246 = vst [vmem:[#allocation2 + $0x2] sm:$0xf] %v244
      %v247 = vld [vmem:[#allocation2] sm:$0x3f]
      %v250 = vunpack.c.l.s4 1966171168
      %v251 = vunpack.c.0.s8 %v250
      %v252 = vlaneseq
      %v253 = vshrl.u32 %v252, 7
      %v254 = vsub.s32 %v251, %v253
      %v255 = vrot.slane %v226, %v254
      %v256 = vcombine.high %v255, %v255
      %v258 = vunpack.c.l.s4 1966171168
      %v259 = vunpack.c.0.s8 %v258
      %v260 = vlaneseq
      %v261 = vshrl.u32 %v260, 7
      %v262 = vsub.s32 %v259, %v261
      %v263 = vrot.slane %v255, %v262
      %v265 = vunpack.c.l.s4 1966171168
      %v266 = vunpack.c.0.s8 %v265
      %v267 = vlaneseq
      %v268 = vshrl.u32 %v267, 7
      %v269 = vsub.s32 %v266, %v268
      %v270 = vrot.slane %v256, %v269
      %v272 = vpack.i.b16 %v263, %v263
      %v274 = vlaneseq
      %v275 = vshrl.u32 %v274, 7
      %v276 = vsub.s32 0, %v275
      %v277 = vrot.slane %v272, %v276
      %v279 = vpack.i.b16 %v270, %v270
      %v281 = vlaneseq
      %v282 = vshrl.u32 %v281, 7
      %v283 = vsub.s32 0, %v282
      %v284 = vrot.slane %v279, %v283
      %v287 = vcombine.low %v277, %v284
      %v289 = vunpack.c.l.s4 1983009808
      %v290 = vunpack.c.0.s8 %v289
      %v291 = vlaneseq
      %v292 = vshrl.u32 %v291, 7
      %v293 = vsub.s32 %v290, %v292
      %v294 = vrot.slane %v287, %v293
      %295 = vrot.lane.b32.xlu0 %v294, 111
      %v296 = vpop.permute.xlu0 %295
      %v297 = vrot.slane %v296, 6
      %vm298 = vcmask 908288
      %v299 = vsel %vm298, %v297, %v296
      %v301 = vmul.bf16 %v247, %v299
      %v302 = vld [vmem:[%s1] sm:$0x3]
      %s303 = scalar_lea.vmem %s1, 2
      %v304 = vld [vmem:[%s303] sm:$0x3]
      %v306 = vcombine.high %v247, %v247
      %v308 = vunpack.c.l.s4 1983009808
      %v309 = vunpack.c.0.s8 %v308
      %v310 = vlaneseq
      %v311 = vshrl.u32 %v310, 7
      %v312 = vsub.s32 %v309, %v311
      %v313 = vrot.slane %v247, %v312
      %v315 = vunpack.c.l.s4 1983009808
      %v316 = vunpack.c.0.s8 %v315
      %v317 = vlaneseq
      %v318 = vshrl.u32 %v317, 7
      %v319 = vsub.s32 %v316, %v318
      %v320 = vrot.slane %v306, %v319
      %v321 = vcombine.high %v313, %v313
      %322 = vrot.lane.b32.xlu0 %v313, 16
      %v323 = vpop.permute.xlu0 %322
      %324 = vrot.lane.b32.xlu0 %v321, 16
      %v325 = vpop.permute.xlu0 %324
      %326 = vrot.lane.b32.xlu0 %v320, 16
      %v327 = vpop.permute.xlu0 %326
      %vm328 = vcmask 130048
      %v329 = vsel %vm328, %v323, %v325
      %v330 = vsel %vm328, %v325, %v327
      %vm331 = vcmask 31744
      %v333 = vsel %vm331, %v304, 0
      %vm335 = vcmask 1041408
      %v337 = vsel %vm335, %v329, 0
      %v340 = vsel %vm335, %v330, 0
      %342 = vmatprep.subr.bf16.mxu0 %v340
      %343 = vmatpush1.bf16.msra.mxu0 %v337
      %344 = vmatprep.subr.bf16.mxu0 0
      %345 = vmatpush1.bf16.msra.mxu0 0
      %346 = vmatprep.subr.bf16.mxu0 0
      %347 = vmatpush1.bf16.msra.mxu0 0
      %348 = vmatprep.subr.bf16.mxu0 0
      %349 = vmatpush1.bf16.msra.mxu0 0
      %350 = vmatprep.subr.bf16.mxu0 0
      %351 = vmatpush1.bf16.msra.mxu0 0
      %352 = vmatprep.subr.bf16.mxu0 0
      %353 = vmatpush1.bf16.msra.mxu0 0
      %354 = vmatprep.subr.bf16.mxu0 0
      %355 = vmatpush1.bf16.msra.mxu0 0
      %356 = vmatprep.subr.bf16.mxu0 0
      %357 = vmatpush1.bf16.msra.mxu0 0
      %358 = vmatprep.subr.bf16.mxu0 0
      %359 = vmatpush1.bf16.msra.mxu0 0
      %360 = vmatprep.subr.bf16.mxu0 0
      %361 = vmatpush1.bf16.msra.mxu0 0
      %362 = vmatprep.subr.bf16.mxu0 0
      %363 = vmatpush1.bf16.msra.mxu0 0
      %364 = vmatprep.subr.bf16.mxu0 0
      %365 = vmatpush1.bf16.msra.mxu0 0
      %366 = vmatprep.subr.bf16.mxu0 0
      %367 = vmatpush1.bf16.msra.mxu0 0
      %368 = vmatprep.subr.bf16.mxu0 0
      %369 = vmatpush1.bf16.msra.mxu0 0
      %370 = vmatprep.subr.bf16.mxu0 0
      %371 = vmatpush1.bf16.msra.mxu0 0
      %372 = vmatprep.subr.bf16.mxu0 0
      %373 = vmatpush1.bf16.msra.mxu0 0
      %374 = vmatprep.mubr.bf16.mxu0 0
      %375 = vmatmul.mubr.bf16.gmra.mrb[0].mxu0 %v333
      %v376 = vpop.f32.mrb[0].mxu0
      %v377 = vadd.f32 0.0, %v376
      %v378 = vpop.f32.mrb[0].mxu0
      %v379 = vadd.f32 0.0, %v378
      %v380 = vpop.f32.mrb[0].mxu0
      %v381 = vpop.f32.mrb[0].mxu0
      %382 = vdwg.mxu0
      %v384 = vcombine.high %v301, %v301
      %v386 = vunpack.c.l.s4 1983009808
      %v387 = vunpack.c.0.s8 %v386
      %v388 = vlaneseq
      %v389 = vshrl.u32 %v388, 7
      %v390 = vsub.s32 %v387, %v389
      %v391 = vrot.slane %v301, %v390
      %v393 = vunpack.c.l.s4 1983009808
      %v394 = vunpack.c.0.s8 %v393
      %v395 = vlaneseq
      %v396 = vshrl.u32 %v395, 7
      %v397 = vsub.s32 %v394, %v396
      %v398 = vrot.slane %v384, %v397
      %v399 = vcombine.high %v391, %v391
      %400 = vrot.lane.b32.xlu0 %v391, 17
      %v401 = vpop.permute.xlu0 %400
      %402 = vrot.lane.b32.xlu0 %v399, 17
      %v403 = vpop.permute.xlu0 %402
      %404 = vrot.lane.b32.xlu0 %v398, 17
      %v405 = vpop.permute.xlu0 %404
      %vm406 = vcmask 138240
      %v407 = vsel %vm406, %v401, %v403
      %v408 = vsel %vm406, %v403, %v405
      %v410 = vsel %vm331, %v302, 0
      %v413 = vsel %vm335, %v407, 0
      %v416 = vsel %vm335, %v408, 0
      %418 = vmatprep.subr.bf16.mxu0 %v416
      %419 = vmatpush1.bf16.msra.mxu0 %v413
      %420 = vmatprep.subr.bf16.mxu0 0
      %421 = vmatpush1.bf16.msra.mxu0 0
      %422 = vmatprep.subr.bf16.mxu0 0
      %423 = vmatpush1.bf16.msra.mxu0 0
      %424 = vmatprep.subr.bf16.mxu0 0
      %425 = vmatpush1.bf16.msra.mxu0 0
      %426 = vmatprep.subr.bf16.mxu0 0
      %427 = vmatpush1.bf16.msra.mxu0 0
      %428 = vmatprep.subr.bf16.mxu0 0
      %429 = vmatpush1.bf16.msra.mxu0 0
      %430 = vmatprep.subr.bf16.mxu0 0
      %431 = vmatpush1.bf16.msra.mxu0 0
      %432 = vmatprep.subr.bf16.mxu0 0
      %433 = vmatpush1.bf16.msra.mxu0 0
      %434 = vmatprep.subr.bf16.mxu0 0
      %435 = vmatpush1.bf16.msra.mxu0 0
      %436 = vmatprep.subr.bf16.mxu0 0
      %437 = vmatpush1.bf16.msra.mxu0 0
      %438 = vmatprep.subr.bf16.mxu0 0
      %439 = vmatpush1.bf16.msra.mxu0 0
      %440 = vmatprep.subr.bf16.mxu0 0
      %441 = vmatpush1.bf16.msra.mxu0 0
      %442 = vmatprep.subr.bf16.mxu0 0
      %443 = vmatpush1.bf16.msra.mxu0 0
      %444 = vmatprep.subr.bf16.mxu0 0
      %445 = vmatpush1.bf16.msra.mxu0 0
      %446 = vmatprep.subr.bf16.mxu0 0
      %447 = vmatpush1.bf16.msra.mxu0 0
      %448 = vmatprep.subr.bf16.mxu0 0
      %449 = vmatpush1.bf16.msra.mxu0 0
      %450 = vmatprep.mubr.bf16.mxu0 0
      %451 = vmatmul.mubr.bf16.gmra.mrb[0].mxu0 %v410
      %v452 = vpop.f32.mrb[0].mxu0
      %v453 = vadd.f32 %v377, %v452
      %v454 = vpop.f32.mrb[0].mxu0
      %v455 = vadd.f32 %v379, %v454
      %v456 = vpop.f32.mrb[0].mxu0
      %v457 = vpop.f32.mrb[0].mxu0
      %458 = vdwg.mxu0
      %v459 = vld [vmem:[#allocation2] sm:$0x3f]
      %v460 = vshrl.u32 %v263, 16
      %v461 = vpack.i.b16 %v460, %v460
      %v463 = vlaneseq
      %v464 = vshrl.u32 %v463, 7
      %v465 = vsub.s32 0, %v464
      %v466 = vrot.slane %v461, %v465
      %v467 = vshrl.u32 %v270, 16
      %v468 = vpack.i.b16 %v467, %v467
      %v470 = vlaneseq
      %v471 = vshrl.u32 %v470, 7
      %v472 = vsub.s32 0, %v471
      %v473 = vrot.slane %v468, %v472
      %v476 = vcombine.low %v466, %v473
      %v478 = vunpack.c.l.s4 1983009808
      %v479 = vunpack.c.0.s8 %v478
      %v480 = vlaneseq
      %v481 = vshrl.u32 %v480, 7
      %v482 = vsub.s32 %v479, %v481
      %v483 = vrot.slane %v476, %v482
      %484 = vrot.lane.b32.xlu0 %v483, 113
      %v485 = vpop.permute.xlu0 %484
      %v486 = vrot.slane %v485, 6
      %vm487 = vcmask 924672
      %v488 = vsel %vm487, %v486, %v485
      %v490 = vmul.bf16 %v459, %v488
      %s491 = scalar_lea.vmem %s1, 4
      %v492 = vld [vmem:[%s491] sm:$0x3]
      %v494 = vcombine.high %v490, %v490
      %v496 = vunpack.c.l.s4 1983009808
      %v497 = vunpack.c.0.s8 %v496
      %v498 = vlaneseq
      %v499 = vshrl.u32 %v498, 7
      %v500 = vsub.s32 %v497, %v499
      %v501 = vrot.slane %v490, %v500
      %v503 = vunpack.c.l.s4 1983009808
      %v504 = vunpack.c.0.s8 %v503
      %v505 = vlaneseq
      %v506 = vshrl.u32 %v505, 7
      %v507 = vsub.s32 %v504, %v506
      %v508 = vrot.slane %v494, %v507
      %v509 = vcombine.high %v501, %v501
      %510 = vrot.lane.b32.xlu0 %v501, 15
      %v511 = vpop.permute.xlu0 %510
      %512 = vrot.lane.b32.xlu0 %v509, 15
      %v513 = vpop.permute.xlu0 %512
      %514 = vrot.lane.b32.xlu0 %v508, 15
      %v515 = vpop.permute.xlu0 %514
      %vm516 = vcmask 121856
      %v517 = vsel %vm516, %v511, %v513
      %v518 = vsel %vm516, %v513, %v515
      %v520 = vsel %vm331, %v492, 0
      %v523 = vsel %vm335, %v517, 0
      %v526 = vsel %vm335, %v518, 0
      %528 = vmatprep.subr.bf16.mxu0 %v526
      %529 = vmatpush1.bf16.msra.mxu0 %v523
      %530 = vmatprep.subr.bf16.mxu0 0
      %531 = vmatpush1.bf16.msra.mxu0 0
      %532 = vmatprep.subr.bf16.mxu0 0
      %533 = vmatpush1.bf16.msra.mxu0 0
      %534 = vmatprep.subr.bf16.mxu0 0
      %535 = vmatpush1.bf16.msra.mxu0 0
      %536 = vmatprep.subr.bf16.mxu0 0
      %537 = vmatpush1.bf16.msra.mxu0 0
      %538 = vmatprep.subr.bf16.mxu0 0
      %539 = vmatpush1.bf16.msra.mxu0 0
      %540 = vmatprep.subr.bf16.mxu0 0
      %541 = vmatpush1.bf16.msra.mxu0 0
      %542 = vmatprep.subr.bf16.mxu0 0
      %543 = vmatpush1.bf16.msra.mxu0 0
      %544 = vmatprep.subr.bf16.mxu0 0
      %545 = vmatpush1.bf16.msra.mxu0 0
      %546 = vmatprep.subr.bf16.mxu0 0
      %547 = vmatpush1.bf16.msra.mxu0 0
      %548 = vmatprep.subr.bf16.mxu0 0
      %549 = vmatpush1.bf16.msra.mxu0 0
      %550 = vmatprep.subr.bf16.mxu0 0
      %551 = vmatpush1.bf16.msra.mxu0 0
      %552 = vmatprep.subr.bf16.mxu0 0
      %553 = vmatpush1.bf16.msra.mxu0 0
      %554 = vmatprep.subr.bf16.mxu0 0
      %555 = vmatpush1.bf16.msra.mxu0 0
      %556 = vmatprep.subr.bf16.mxu0 0
      %557 = vmatpush1.bf16.msra.mxu0 0
      %558 = vmatprep.subr.bf16.mxu0 0
      %559 = vmatpush1.bf16.msra.mxu0 0
      %560 = vmatprep.mubr.bf16.mxu0 0
      %561 = vmatmul.mubr.bf16.gmra.mrb[0].mxu0 %v520
      %v562 = vpop.f32.mrb[0].mxu0
      %v563 = vadd.f32 0.0, %v562
      %v564 = vpop.f32.mrb[0].mxu0
      %v565 = vadd.f32 0.0, %v564
      %v566 = vpop.f32.mrb[0].mxu0
      %v567 = vpop.f32.mrb[0].mxu0
      %568 = vdwg.mxu0
      %v569 = vadd.f32 %v453, %v563
      %v570 = vadd.f32 %v455, %v565
      %v571 = vld [vmem:[#allocation2] sm:$0x3f]
      %572 = vrot.lane.b32.xlu0 %v294, 127
      %v573 = vpop.permute.xlu0 %572
      %v574 = vrot.slane %v573, 6
      %vm575 = vcmask 1039360
      %v576 = vsel %vm575, %v574, %v573
      %v578 = vmul.bf16 %v571, %v576
      %s579 = scalar_lea.vmem %s1, 6
      %v580 = vld [vmem:[%s579] sm:$0x3]
      %v582 = vcombine.high %v578, %v578
      %v584 = vunpack.c.l.s4 1983009808
      %v585 = vunpack.c.0.s8 %v584
      %v586 = vlaneseq
      %v587 = vshrl.u32 %v586, 7
      %v588 = vsub.s32 %v585, %v587
      %v589 = vrot.slane %v578, %v588
      %v591 = vunpack.c.l.s4 1983009808
      %v592 = vunpack.c.0.s8 %v591
      %v593 = vlaneseq
      %v594 = vshrl.u32 %v593, 7
      %v595 = vsub.s32 %v592, %v594
      %v596 = vrot.slane %v582, %v595
      %v597 = vcombine.high %v589, %v589
      %598 = vrot.lane.b32.xlu0 %v589, 1
      %v599 = vpop.permute.xlu0 %598
      %600 = vrot.lane.b32.xlu0 %v597, 1
      %v601 = vpop.permute.xlu0 %600
      %602 = vrot.lane.b32.xlu0 %v596, 1
      %v603 = vpop.permute.xlu0 %602
      %vm604 = vcmask 7168
      %v605 = vsel %vm604, %v599, %v601
      %v606 = vsel %vm604, %v601, %v603
      %v608 = vsel %vm331, %v580, 0
      %v611 = vsel %vm335, %v605, 0
      %v614 = vsel %vm335, %v606, 0
      %616 = vmatprep.subr.bf16.mxu0 %v614
      %617 = vmatpush1.bf16.msra.mxu0 %v611
      %618 = vmatprep.subr.bf16.mxu0 0
      %619 = vmatpush1.bf16.msra.mxu0 0
      %620 = vmatprep.subr.bf16.mxu0 0
      %621 = vmatpush1.bf16.msra.mxu0 0
      %622 = vmatprep.subr.bf16.mxu0 0
      %623 = vmatpush1.bf16.msra.mxu0 0
      %624 = vmatprep.subr.bf16.mxu0 0
      %625 = vmatpush1.bf16.msra.mxu0 0
      %626 = vmatprep.subr.bf16.mxu0 0
      %627 = vmatpush1.bf16.msra.mxu0 0
      %628 = vmatprep.subr.bf16.mxu0 0
      %629 = vmatpush1.bf16.msra.mxu0 0
      %630 = vmatprep.subr.bf16.mxu0 0
      %631 = vmatpush1.bf16.msra.mxu0 0
      %632 = vmatprep.subr.bf16.mxu0 0
      %633 = vmatpush1.bf16.msra.mxu0 0
      %634 = vmatprep.subr.bf16.mxu0 0
      %635 = vmatpush1.bf16.msra.mxu0 0
      %636 = vmatprep.subr.bf16.mxu0 0
      %637 = vmatpush1.bf16.msra.mxu0 0
      %638 = vmatprep.subr.bf16.mxu0 0
      %639 = vmatpush1.bf16.msra.mxu0 0
      %640 = vmatprep.subr.bf16.mxu0 0
      %641 = vmatpush1.bf16.msra.mxu0 0
      %642 = vmatprep.subr.bf16.mxu0 0
      %643 = vmatpush1.bf16.msra.mxu0 0
      %644 = vmatprep.subr.bf16.mxu0 0
      %645 = vmatpush1.bf16.msra.mxu0 0
      %646 = vmatprep.subr.bf16.mxu0 0
      %647 = vmatpush1.bf16.msra.mxu0 0
      %648 = vmatprep.mubr.bf16.mxu0 0
      %649 = vmatmul.mubr.bf16.gmra.mrb[0].mxu0 %v608
      %v650 = vpop.f32.mrb[0].mxu0
      %v651 = vadd.f32 0.0, %v650
      %v652 = vpop.f32.mrb[0].mxu0
      %v653 = vadd.f32 0.0, %v652
      %v654 = vpop.f32.mrb[0].mxu0
      %v655 = vpop.f32.mrb[0].mxu0
      %656 = vdwg.mxu0
      %v657 = vadd.f32 %v569, %v651
      %v658 = vadd.f32 %v570, %v653
      %v659 = vld [vmem:[#allocation2 + $0x2] sm:$0xf]
      %s660 = scalar_lea.vmem %s1, 8
      %v661 = vld [vmem:[%s660] sm:$0x3]
      %v664 = vunpack.c.l.s4 1983009808
      %v665 = vunpack.c.0.s8 %v664
      %v666 = vlaneseq
      %v667 = vshrl.u32 %v666, 7
      %v668 = vsub.s32 %v665, %v667
      %v669 = vrot.slane %v659, %v668
      %v670 = vcombine.high %v669, %v669
      %v672 = vsel %vm331, %v661, 0
      %v675 = vsel %vm335, %v669, 0
      %v678 = vsel %vm335, %v670, 0
      %680 = vmatprep.subr.bf16.mxu0 %v678
      %681 = vmatpush1.bf16.msra.mxu0 %v675
      %682 = vmatprep.subr.bf16.mxu0 0
      %683 = vmatpush1.bf16.msra.mxu0 0
      %684 = vmatprep.subr.bf16.mxu0 0
      %685 = vmatpush1.bf16.msra.mxu0 0
      %686 = vmatprep.subr.bf16.mxu0 0
      %687 = vmatpush1.bf16.msra.mxu0 0
      %688 = vmatprep.subr.bf16.mxu0 0
      %689 = vmatpush1.bf16.msra.mxu0 0
      %690 = vmatprep.subr.bf16.mxu0 0
      %691 = vmatpush1.bf16.msra.mxu0 0
      %692 = vmatprep.subr.bf16.mxu0 0
      %693 = vmatpush1.bf16.msra.mxu0 0
      %694 = vmatprep.subr.bf16.mxu0 0
      %695 = vmatpush1.bf16.msra.mxu0 0
      %696 = vmatprep.subr.bf16.mxu0 0
      %697 = vmatpush1.bf16.msra.mxu0 0
      %698 = vmatprep.subr.bf16.mxu0 0
      %699 = vmatpush1.bf16.msra.mxu0 0
      %700 = vmatprep.subr.bf16.mxu0 0
      %701 = vmatpush1.bf16.msra.mxu0 0
      %702 = vmatprep.subr.bf16.mxu0 0
      %703 = vmatpush1.bf16.msra.mxu0 0
      %704 = vmatprep.subr.bf16.mxu0 0
      %705 = vmatpush1.bf16.msra.mxu0 0
      %706 = vmatprep.subr.bf16.mxu0 0
      %707 = vmatpush1.bf16.msra.mxu0 0
      %708 = vmatprep.subr.bf16.mxu0 0
      %709 = vmatpush1.bf16.msra.mxu0 0
      %710 = vmatprep.subr.bf16.mxu0 0
      %711 = vmatpush1.bf16.msra.mxu0 0
      %712 = vmatprep.mubr.bf16.mxu0 0
      %713 = vmatmul.mubr.bf16.gmra.mrb[0].mxu0 %v672
      %v714 = vpop.f32.mrb[0].mxu0
      %v715 = vadd.f32 0.0, %v714
      %v716 = vpop.f32.mrb[0].mxu0
      %v717 = vadd.f32 0.0, %v716
      %v718 = vpop.f32.mrb[0].mxu0
      %v719 = vpop.f32.mrb[0].mxu0
      %720 = vdwg.mxu0
      %v721 = vadd.f32 %v657, %v715
      %v722 = vadd.f32 %v658, %v717
      %v723 = vld [vmem:[#allocation2 + $0x2] sm:$0x3f]
      %724 = vrot.lane.b32.xlu0 %v483, 1
      %v725 = vpop.permute.xlu0 %724
      %v726 = vrot.slane %v725, 6
      %v727 = vsel %vm604, %v726, %v725
      %v729 = vmul.bf16 %v723, %v727
      %s730 = scalar_lea.vmem %s1, 10
      %v731 = vld [vmem:[%s730] sm:$0x3]
      %v733 = vcombine.high %v729, %v729
      %v735 = vunpack.c.l.s4 1983009808
      %v736 = vunpack.c.0.s8 %v735
      %v737 = vlaneseq
      %v738 = vshrl.u32 %v737, 7
      %v739 = vsub.s32 %v736, %v738
      %v740 = vrot.slane %v729, %v739
      %v742 = vunpack.c.l.s4 1983009808
      %v743 = vunpack.c.0.s8 %v742
      %v744 = vlaneseq
      %v745 = vshrl.u32 %v744, 7
      %v746 = vsub.s32 %v743, %v745
      %v747 = vrot.slane %v733, %v746
      %v748 = vcombine.high %v740, %v740
      %749 = vrot.lane.b32.xlu0 %v740, 127
      %v750 = vpop.permute.xlu0 %749
      %751 = vrot.lane.b32.xlu0 %v748, 127
      %v752 = vpop.permute.xlu0 %751
      %753 = vrot.lane.b32.xlu0 %v747, 127
      %v754 = vpop.permute.xlu0 %753
      %v755 = vsel %vm575, %v750, %v752
      %v756 = vsel %vm575, %v752, %v754
      %v758 = vsel %vm331, %v731, 0
      %v761 = vsel %vm335, %v755, 0
      %v764 = vsel %vm335, %v756, 0
      %766 = vmatprep.subr.bf16.mxu0 %v764
      %767 = vmatpush1.bf16.msra.mxu0 %v761
      %768 = vmatprep.subr.bf16.mxu0 0
      %769 = vmatpush1.bf16.msra.mxu0 0
      %770 = vmatprep.subr.bf16.mxu0 0
      %771 = vmatpush1.bf16.msra.mxu0 0
      %772 = vmatprep.subr.bf16.mxu0 0
      %773 = vmatpush1.bf16.msra.mxu0 0
      %774 = vmatprep.subr.bf16.mxu0 0
      %775 = vmatpush1.bf16.msra.mxu0 0
      %776 = vmatprep.subr.bf16.mxu0 0
      %777 = vmatpush1.bf16.msra.mxu0 0
      %778 = vmatprep.subr.bf16.mxu0 0
      %779 = vmatpush1.bf16.msra.mxu0 0
      %780 = vmatprep.subr.bf16.mxu0 0
      %781 = vmatpush1.bf16.msra.mxu0 0
      %782 = vmatprep.subr.bf16.mxu0 0
      %783 = vmatpush1.bf16.msra.mxu0 0
      %784 = vmatprep.subr.bf16.mxu0 0
      %785 = vmatpush1.bf16.msra.mxu0 0
      %786 = vmatprep.subr.bf16.mxu0 0
      %787 = vmatpush1.bf16.msra.mxu0 0
      %788 = vmatprep.subr.bf16.mxu0 0
      %789 = vmatpush1.bf16.msra.mxu0 0
      %790 = vmatprep.subr.bf16.mxu0 0
      %791 = vmatpush1.bf16.msra.mxu0 0
      %792 = vmatprep.subr.bf16.mxu0 0
      %793 = vmatpush1.bf16.msra.mxu0 0
      %794 = vmatprep.subr.bf16.mxu0 0
      %795 = vmatpush1.bf16.msra.mxu0 0
      %796 = vmatprep.subr.bf16.mxu0 0
      %797 = vmatpush1.bf16.msra.mxu0 0
      %798 = vmatprep.mubr.bf16.mxu0 0
      %799 = vmatmul.mubr.bf16.gmra.mrb[0].mxu0 %v758
      %v800 = vpop.f32.mrb[0].mxu0
      %v801 = vadd.f32 0.0, %v800
      %v802 = vpop.f32.mrb[0].mxu0
      %v803 = vadd.f32 0.0, %v802
      %v804 = vpop.f32.mrb[0].mxu0
      %v805 = vpop.f32.mrb[0].mxu0
      %806 = vdwg.mxu0
      %v807 = vadd.f32 %v721, %v801
      %v808 = vadd.f32 %v722, %v803
      %v809 = vld [vmem:[#allocation2 + $0x2] sm:$0x3f]
      %810 = vrot.lane.b32.xlu0 %v294, 15
      %v811 = vpop.permute.xlu0 %810
      %v812 = vrot.slane %v811, 6
      %v813 = vsel %vm516, %v812, %v811
      %v815 = vmul.bf16 %v809, %v813
      %s816 = scalar_lea.vmem %s1, 12
      %v817 = vld [vmem:[%s816] sm:$0x3]
      %v819 = vcombine.high %v815, %v815
      %v821 = vunpack.c.l.s4 1983009808
      %v822 = vunpack.c.0.s8 %v821
      %v823 = vlaneseq
      %v824 = vshrl.u32 %v823, 7
      %v825 = vsub.s32 %v822, %v824
      %v826 = vrot.slane %v815, %v825
      %v828 = vunpack.c.l.s4 1983009808
      %v829 = vunpack.c.0.s8 %v828
      %v830 = vlaneseq
      %v831 = vshrl.u32 %v830, 7
      %v832 = vsub.s32 %v829, %v831
      %v833 = vrot.slane %v819, %v832
      %v834 = vcombine.high %v826, %v826
      %835 = vrot.lane.b32.xlu0 %v826, 113
      %v836 = vpop.permute.xlu0 %835
      %837 = vrot.lane.b32.xlu0 %v834, 113
      %v838 = vpop.permute.xlu0 %837
      %839 = vrot.lane.b32.xlu0 %v833, 113
      %v840 = vpop.permute.xlu0 %839
      %v841 = vsel %vm487, %v836, %v838
      %v842 = vsel %vm487, %v838, %v840
      %v844 = vsel %vm331, %v817, 0
      %v847 = vsel %vm335, %v841, 0
      %v850 = vsel %vm335, %v842, 0
      %852 = vmatprep.subr.bf16.mxu0 %v850
      %853 = vmatpush1.bf16.msra.mxu0 %v847
      %854 = vmatprep.subr.bf16.mxu0 0
      %855 = vmatpush1.bf16.msra.mxu0 0
      %856 = vmatprep.subr.bf16.mxu0 0
      %857 = vmatpush1.bf16.msra.mxu0 0
      %858 = vmatprep.subr.bf16.mxu0 0
      %859 = vmatpush1.bf16.msra.mxu0 0
      %860 = vmatprep.subr.bf16.mxu0 0
      %861 = vmatpush1.bf16.msra.mxu0 0
      %862 = vmatprep.subr.bf16.mxu0 0
      %863 = vmatpush1.bf16.msra.mxu0 0
      %864 = vmatprep.subr.bf16.mxu0 0
      %865 = vmatpush1.bf16.msra.mxu0 0
      %866 = vmatprep.subr.bf16.mxu0 0
      %867 = vmatpush1.bf16.msra.mxu0 0
      %868 = vmatprep.subr.bf16.mxu0 0
      %869 = vmatpush1.bf16.msra.mxu0 0
      %870 = vmatprep.subr.bf16.mxu0 0
      %871 = vmatpush1.bf16.msra.mxu0 0
      %872 = vmatprep.subr.bf16.mxu0 0
      %873 = vmatpush1.bf16.msra.mxu0 0
      %874 = vmatprep.subr.bf16.mxu0 0
      %875 = vmatpush1.bf16.msra.mxu0 0
      %876 = vmatprep.subr.bf16.mxu0 0
      %877 = vmatpush1.bf16.msra.mxu0 0
      %878 = vmatprep.subr.bf16.mxu0 0
      %879 = vmatpush1.bf16.msra.mxu0 0
      %880 = vmatprep.subr.bf16.mxu0 0
      %881 = vmatpush1.bf16.msra.mxu0 0
      %882 = vmatprep.subr.bf16.mxu0 0
      %883 = vmatpush1.bf16.msra.mxu0 0
      %884 = vmatprep.mubr.bf16.mxu0 0
      %885 = vmatmul.mubr.bf16.gmra.mrb[0].mxu0 %v844
      %v886 = vpop.f32.mrb[0].mxu0
      %v887 = vadd.f32 0.0, %v886
      %v888 = vpop.f32.mrb[0].mxu0
      %v889 = vadd.f32 0.0, %v888
      %v890 = vpop.f32.mrb[0].mxu0
      %v891 = vpop.f32.mrb[0].mxu0
      %892 = vdwg.mxu0
      %v893 = vadd.f32 %v807, %v887
      %v894 = vadd.f32 %v808, %v889
      %v895 = vld [vmem:[#allocation2 + $0x2] sm:$0x3f]
      %s896 = scalar_lea.vmem %s1, 14
      %v897 = vld [vmem:[%s896] sm:$0x3]
      %v899 = vcombine.high %v895, %v895
      %v901 = vunpack.c.l.s4 1983009808
      %v902 = vunpack.c.0.s8 %v901
      %v903 = vlaneseq
      %v904 = vshrl.u32 %v903, 7
      %v905 = vsub.s32 %v902, %v904
      %v906 = vrot.slane %v895, %v905
      %v908 = vunpack.c.l.s4 1983009808
      %v909 = vunpack.c.0.s8 %v908
      %v910 = vlaneseq
      %v911 = vshrl.u32 %v910, 7
      %v912 = vsub.s32 %v909, %v911
      %v913 = vrot.slane %v899, %v912
      %v914 = vcombine.high %v906, %v906
      %915 = vrot.lane.b32.xlu0 %v906, 112
      %v916 = vpop.permute.xlu0 %915
      %917 = vrot.lane.b32.xlu0 %v914, 112
      %v918 = vpop.permute.xlu0 %917
      %919 = vrot.lane.b32.xlu0 %v913, 112
      %v920 = vpop.permute.xlu0 %919
      %vm921 = vcmask 916480
      %v922 = vsel %vm921, %v916, %v918
      %v923 = vsel %vm921, %v918, %v920
      %v925 = vsel %vm331, %v897, 0
      %v928 = vsel %vm335, %v922, 0
      %v931 = vsel %vm335, %v923, 0
      %933 = vmatprep.subr.bf16.mxu0 %v931
      %934 = vmatpush1.bf16.msra.mxu0 %v928
      %935 = vmatprep.subr.bf16.mxu0 0
      %936 = vmatpush1.bf16.msra.mxu0 0
      %937 = vmatprep.subr.bf16.mxu0 0
      %938 = vmatpush1.bf16.msra.mxu0 0
      %939 = vmatprep.subr.bf16.mxu0 0
      %940 = vmatpush1.bf16.msra.mxu0 0
      %941 = vmatprep.subr.bf16.mxu0 0
      %942 = vmatpush1.bf16.msra.mxu0 0
      %943 = vmatprep.subr.bf16.mxu0 0
      %944 = vmatpush1.bf16.msra.mxu0 0
      %945 = vmatprep.subr.bf16.mxu0 0
      %946 = vmatpush1.bf16.msra.mxu0 0
      %947 = vmatprep.subr.bf16.mxu0 0
      %948 = vmatpush1.bf16.msra.mxu0 0
      %949 = vmatprep.subr.bf16.mxu0 0
      %950 = vmatpush1.bf16.msra.mxu0 0
      %951 = vmatprep.subr.bf16.mxu0 0
      %952 = vmatpush1.bf16.msra.mxu0 0
      %953 = vmatprep.subr.bf16.mxu0 0
      %954 = vmatpush1.bf16.msra.mxu0 0
      %955 = vmatprep.subr.bf16.mxu0 0
      %956 = vmatpush1.bf16.msra.mxu0 0
      %957 = vmatprep.subr.bf16.mxu0 0
      %958 = vmatpush1.bf16.msra.mxu0 0
      %959 = vmatprep.subr.bf16.mxu0 0
      %960 = vmatpush1.bf16.msra.mxu0 0
      %961 = vmatprep.subr.bf16.mxu0 0
      %962 = vmatpush1.bf16.msra.mxu0 0
      %963 = vmatprep.subr.bf16.mxu0 0
      %964 = vmatpush1.bf16.msra.mxu0 0
      %965 = vmatprep.mubr.bf16.mxu0 0
      %966 = vmatmul.mubr.bf16.gmra.mrb[0].mxu0 %v925
      %v967 = vpop.f32.mrb[0].mxu0
      %v968 = vadd.f32 0.0, %v967
      %v969 = vpop.f32.mrb[0].mxu0
      %v970 = vadd.f32 0.0, %v969
      %v971 = vpop.f32.mrb[0].mxu0
      %v972 = vpop.f32.mrb[0].mxu0
      %973 = vdwg.mxu0
      %v974 = vadd.f32 %v893, %v968
      %v975 = vadd.f32 %v894, %v970
      %v976 = vld [vmem:[#allocation2 + $0x2] sm:$0x3f]
      %977 = vrot.lane.b32.xlu0 %v483, 17
      %v978 = vpop.permute.xlu0 %977
      %v979 = vrot.slane %v978, 6
      %v980 = vsel %vm406, %v979, %v978
      %v982 = vmul.bf16 %v976, %v980
      %s983 = scalar_lea.vmem %s1, 16
      %v984 = vld [vmem:[%s983] sm:$0x3]
      %v986 = vcombine.high %v982, %v982
      %v988 = vunpack.c.l.s4 1983009808
      %v989 = vunpack.c.0.s8 %v988
      %v990 = vlaneseq
      %v991 = vshrl.u32 %v990, 7
      %v992 = vsub.s32 %v989, %v991
      %v993 = vrot.slane %v982, %v992
      %v995 = vunpack.c.l.s4 1983009808
      %v996 = vunpack.c.0.s8 %v995
      %v997 = vlaneseq
      %v998 = vshrl.u32 %v997, 7
      %v999 = vsub.s32 %v996, %v998
      %v1000 = vrot.slane %v986, %v999
      %v1001 = vcombine.high %v993, %v993
      %1002 = vrot.lane.b32.xlu0 %v993, 111
      %v1003 = vpop.permute.xlu0 %1002
      %1004 = vrot.lane.b32.xlu0 %v1001, 111
      %v1005 = vpop.permute.xlu0 %1004
      %1006 = vrot.lane.b32.xlu0 %v1000, 111
      %v1007 = vpop.permute.xlu0 %1006
      %v1008 = vsel %vm298, %v1003, %v1005
      %v1009 = vsel %vm298, %v1005, %v1007
      %v1011 = vsel %vm331, %v984, 0
      %v1014 = vsel %vm335, %v1008, 0
      %v1017 = vsel %vm335, %v1009, 0
      %1019 = vmatprep.subr.bf16.mxu0 %v1017
      %1020 = vmatpush1.bf16.msra.mxu0 %v1014
      %1021 = vmatprep.subr.bf16.mxu0 0
      %1022 = vmatpush1.bf16.msra.mxu0 0
      %1023 = vmatprep.subr.bf16.mxu0 0
      %1024 = vmatpush1.bf16.msra.mxu0 0
      %1025 = vmatprep.subr.bf16.mxu0 0
      %1026 = vmatpush1.bf16.msra.mxu0 0
      %1027 = vmatprep.subr.bf16.mxu0 0
      %1028 = vmatpush1.bf16.msra.mxu0 0
      %1029 = vmatprep.subr.bf16.mxu0 0
      %1030 = vmatpush1.bf16.msra.mxu0 0
      %1031 = vmatprep.subr.bf16.mxu0 0
      %1032 = vmatpush1.bf16.msra.mxu0 0
      %1033 = vmatprep.subr.bf16.mxu0 0
      %1034 = vmatpush1.bf16.msra.mxu0 0
      %1035 = vmatprep.subr.bf16.mxu0 0
      %1036 = vmatpush1.bf16.msra.mxu0 0
      %1037 = vmatprep.subr.bf16.mxu0 0
      %1038 = vmatpush1.bf16.msra.mxu0 0
      %1039 = vmatprep.subr.bf16.mxu0 0
      %1040 = vmatpush1.bf16.msra.mxu0 0
      %1041 = vmatprep.subr.bf16.mxu0 0
      %1042 = vmatpush1.bf16.msra.mxu0 0
      %1043 = vmatprep.subr.bf16.mxu0 0
      %1044 = vmatpush1.bf16.msra.mxu0 0
      %1045 = vmatprep.subr.bf16.mxu0 0
      %1046 = vmatpush1.bf16.msra.mxu0 0
      %1047 = vmatprep.subr.bf16.mxu0 0
      %1048 = vmatpush1.bf16.msra.mxu0 0
      %1049 = vmatprep.subr.bf16.mxu0 0
      %1050 = vmatpush1.bf16.msra.mxu0 0
      %1051 = vmatprep.mubr.bf16.mxu0 0
      %1052 = vmatmul.mubr.bf16.gmra.mrb[0].mxu0 %v1011
      %v1053 = vpop.f32.mrb[0].mxu0
      %v1054 = vadd.f32 0.0, %v1053
      %v1055 = vpop.f32.mrb[0].mxu0
      %v1056 = vadd.f32 0.0, %v1055
      %v1057 = vpop.f32.mrb[0].mxu0
      %v1058 = vpop.f32.mrb[0].mxu0
      %1059 = vdwg.mxu0
      %v1060 = vadd.f32 %v974, %v1054
      %v1061 = vadd.f32 %v975, %v1056
      %v1062 = vld [vmem:[%s3] sm:$0xf]
      %1064 = vset.pattern.permute.xlu0 0
      %1065 = vperm.xlu0 %1064, %v1062
      %v1066 = vpop.permute.xlu0 %1065
      %v1068 = vmul.f32 %v1060, %v1066
      %v1069 = vmul.f32 %v1061, %v1066
      %1070 = vset.pattern.permute.xlu0 1
      %1071 = vperm.xlu0 %1070, %v1062
      %v1072 = vpop.permute.xlu0 %1071
      %v1074 = vadd.f32 %v1068, %v1072
      %v1075 = vadd.f32 %v1069, %v1072
      %v1076 = vmax.f32 %v1074, 0.0
      %v1077 = vmax.f32 %v1075, 0.0
      %v1078 = vpack.c.bf16 %v1076, %v1076
      %v1079 = vpack.c.bf16 %v1077, %v1077
      %v1082 = vcombine.low %v1078, %v1079
      %v1084 = vunpack.c.l.s4 1983009808
      %v1085 = vunpack.c.0.s8 %v1084
      %v1086 = vlaneseq
      %v1087 = vshrl.u32 %v1086, 7
      %v1088 = vsub.s32 %v1085, %v1087
      %v1089 = vrot.slane %v1082, %v1088
      %1091 = vst [vmem:[#allocation2 + $0x2] sm:$0xf] %v1089
      %v1092 = vld [vmem:[#allocation2] sm:$0x3f]
      %v1093 = vmul.bf16 %v1092, %v299
      %v1094 = vld [vmem:[%s2] sm:$0x3]
      %s1095 = scalar_lea.vmem %s2, 2
      %v1096 = vld [vmem:[%s1095] sm:$0x3]
      %v1098 = vcombine.high %v1092, %v1092
      %v1100 = vunpack.c.l.s4 1983009808
      %v1101 = vunpack.c.0.s8 %v1100
      %v1102 = vlaneseq
      %v1103 = vshrl.u32 %v1102, 7
      %v1104 = vsub.s32 %v1101, %v1103
      %v1105 = vrot.slane %v1092, %v1104
      %v1107 = vunpack.c.l.s4 1983009808
      %v1108 = vunpack.c.0.s8 %v1107
      %v1109 = vlaneseq
      %v1110 = vshrl.u32 %v1109, 7
      %v1111 = vsub.s32 %v1108, %v1110
      %v1112 = vrot.slane %v1098, %v1111
      %v1113 = vcombine.high %v1105, %v1105
      %1114 = vrot.lane.b32.xlu0 %v1105, 16
      %v1115 = vpop.permute.xlu0 %1114
      %1116 = vrot.lane.b32.xlu0 %v1113, 16
      %v1117 = vpop.permute.xlu0 %1116
      %1118 = vrot.lane.b32.xlu0 %v1112, 16
      %v1119 = vpop.permute.xlu0 %1118
      %v1120 = vsel %vm328, %v1115, %v1117
      %v1121 = vsel %vm328, %v1117, %v1119
      %v1123 = vsel %vm331, %v1096, 0
      %v1126 = vsel %vm335, %v1120, 0
      %v1129 = vsel %vm335, %v1121, 0
      %1131 = vmatprep.subr.bf16.mxu0 %v1129
      %1132 = vmatpush1.bf16.msra.mxu0 %v1126
      %1133 = vmatprep.subr.bf16.mxu0 0
      %1134 = vmatpush1.bf16.msra.mxu0 0
      %1135 = vmatprep.subr.bf16.mxu0 0
      %1136 = vmatpush1.bf16.msra.mxu0 0
      %1137 = vmatprep.subr.bf16.mxu0 0
      %1138 = vmatpush1.bf16.msra.mxu0 0
      %1139 = vmatprep.subr.bf16.mxu0 0
      %1140 = vmatpush1.bf16.msra.mxu0 0
      %1141 = vmatprep.subr.bf16.mxu0 0
      %1142 = vmatpush1.bf16.msra.mxu0 0
      %1143 = vmatprep.subr.bf16.mxu0 0
      %1144 = vmatpush1.bf16.msra.mxu0 0
      %1145 = vmatprep.subr.bf16.mxu0 0
      %1146 = vmatpush1.bf16.msra.mxu0 0
      %1147 = vmatprep.subr.bf16.mxu0 0
      %1148 = vmatpush1.bf16.msra.mxu0 0
      %1149 = vmatprep.subr.bf16.mxu0 0
      %1150 = vmatpush1.bf16.msra.mxu0 0
      %1151 = vmatprep.subr.bf16.mxu0 0
      %1152 = vmatpush1.bf16.msra.mxu0 0
      %1153 = vmatprep.subr.bf16.mxu0 0
      %1154 = vmatpush1.bf16.msra.mxu0 0
      %1155 = vmatprep.subr.bf16.mxu0 0
      %1156 = vmatpush1.bf16.msra.mxu0 0
      %1157 = vmatprep.subr.bf16.mxu0 0
      %1158 = vmatpush1.bf16.msra.mxu0 0
      %1159 = vmatprep.subr.bf16.mxu0 0
      %1160 = vmatpush1.bf16.msra.mxu0 0
      %1161 = vmatprep.subr.bf16.mxu0 0
      %1162 = vmatpush1.bf16.msra.mxu0 0
      %1163 = vmatprep.mubr.bf16.mxu0 0
      %1164 = vmatmul.mubr.bf16.gmra.mrb[0].mxu0 %v1123
      %v1165 = vpop.f32.mrb[0].mxu0
      %v1166 = vadd.f32 0.0, %v1165
      %v1167 = vpop.f32.mrb[0].mxu0
      %v1168 = vadd.f32 0.0, %v1167
      %v1169 = vpop.f32.mrb[0].mxu0
      %v1170 = vpop.f32.mrb[0].mxu0
      %1171 = vdwg.mxu0
      %v1173 = vcombine.high %v1093, %v1093
      %v1175 = vunpack.c.l.s4 1983009808
      %v1176 = vunpack.c.0.s8 %v1175
      %v1177 = vlaneseq
      %v1178 = vshrl.u32 %v1177, 7
      %v1179 = vsub.s32 %v1176, %v1178
      %v1180 = vrot.slane %v1093, %v1179
      %v1182 = vunpack.c.l.s4 1983009808
      %v1183 = vunpack.c.0.s8 %v1182
      %v1184 = vlaneseq
      %v1185 = vshrl.u32 %v1184, 7
      %v1186 = vsub.s32 %v1183, %v1185
      %v1187 = vrot.slane %v1173, %v1186
      %v1188 = vcombine.high %v1180, %v1180
      %1189 = vrot.lane.b32.xlu0 %v1180, 17
      %v1190 = vpop.permute.xlu0 %1189
      %1191 = vrot.lane.b32.xlu0 %v1188, 17
      %v1192 = vpop.permute.xlu0 %1191
      %1193 = vrot.lane.b32.xlu0 %v1187, 17
      %v1194 = vpop.permute.xlu0 %1193
      %v1195 = vsel %vm406, %v1190, %v1192
      %v1196 = vsel %vm406, %v1192, %v1194
      %v1198 = vsel %vm331, %v1094, 0
      %v1201 = vsel %vm335, %v1195, 0
      %v1204 = vsel %vm335, %v1196, 0
      %1206 = vmatprep.subr.bf16.mxu0 %v1204
      %1207 = vmatpush1.bf16.msra.mxu0 %v1201
      %1208 = vmatprep.subr.bf16.mxu0 0
      %1209 = vmatpush1.bf16.msra.mxu0 0
      %1210 = vmatprep.subr.bf16.mxu0 0
      %1211 = vmatpush1.bf16.msra.mxu0 0
      %1212 = vmatprep.subr.bf16.mxu0 0
      %1213 = vmatpush1.bf16.msra.mxu0 0
      %1214 = vmatprep.subr.bf16.mxu0 0
      %1215 = vmatpush1.bf16.msra.mxu0 0
      %1216 = vmatprep.subr.bf16.mxu0 0
      %1217 = vmatpush1.bf16.msra.mxu0 0
      %1218 = vmatprep.subr.bf16.mxu0 0
      %1219 = vmatpush1.bf16.msra.mxu0 0
      %1220 = vmatprep.subr.bf16.mxu0 0
      %1221 = vmatpush1.bf16.msra.mxu0 0
      %1222 = vmatprep.subr.bf16.mxu0 0
      %1223 = vmatpush1.bf16.msra.mxu0 0
      %1224 = vmatprep.subr.bf16.mxu0 0
      %1225 = vmatpush1.bf16.msra.mxu0 0
      %1226 = vmatprep.subr.bf16.mxu0 0
      %1227 = vmatpush1.bf16.msra.mxu0 0
      %1228 = vmatprep.subr.bf16.mxu0 0
      %1229 = vmatpush1.bf16.msra.mxu0 0
      %1230 = vmatprep.subr.bf16.mxu0 0
      %1231 = vmatpush1.bf16.msra.mxu0 0
      %1232 = vmatprep.subr.bf16.mxu0 0
      %1233 = vmatpush1.bf16.msra.mxu0 0
      %1234 = vmatprep.subr.bf16.mxu0 0
      %1235 = vmatpush1.bf16.msra.mxu0 0
      %1236 = vmatprep.subr.bf16.mxu0 0
      %1237 = vmatpush1.bf16.msra.mxu0 0
      %1238 = vmatprep.mubr.bf16.mxu0 0
      %1239 = vmatmul.mubr.bf16.gmra.mrb[0].mxu0 %v1198
      %v1240 = vpop.f32.mrb[0].mxu0
      %v1241 = vadd.f32 %v1166, %v1240
      %v1242 = vpop.f32.mrb[0].mxu0
      %v1243 = vadd.f32 %v1168, %v1242
      %v1244 = vpop.f32.mrb[0].mxu0
      %v1245 = vpop.f32.mrb[0].mxu0
      %1246 = vdwg.mxu0
      %v1247 = vld [vmem:[#allocation2] sm:$0x3f]
      %v1248 = vmul.bf16 %v1247, %v488
      %s1249 = scalar_lea.vmem %s2, 4
      %v1250 = vld [vmem:[%s1249] sm:$0x3]
      %v1252 = vcombine.high %v1248, %v1248
      %v1254 = vunpack.c.l.s4 1983009808
      %v1255 = vunpack.c.0.s8 %v1254
      %v1256 = vlaneseq
      %v1257 = vshrl.u32 %v1256, 7
      %v1258 = vsub.s32 %v1255, %v1257
      %v1259 = vrot.slane %v1248, %v1258
      %v1261 = vunpack.c.l.s4 1983009808
      %v1262 = vunpack.c.0.s8 %v1261
      %v1263 = vlaneseq
      %v1264 = vshrl.u32 %v1263, 7
      %v1265 = vsub.s32 %v1262, %v1264
      %v1266 = vrot.slane %v1252, %v1265
      %v1267 = vcombine.high %v1259, %v1259
      %1268 = vrot.lane.b32.xlu0 %v1259, 15
      %v1269 = vpop.permute.xlu0 %1268
      %1270 = vrot.lane.b32.xlu0 %v1267, 15
      %v1271 = vpop.permute.xlu0 %1270
      %1272 = vrot.lane.b32.xlu0 %v1266, 15
      %v1273 = vpop.permute.xlu0 %1272
      %v1274 = vsel %vm516, %v1269, %v1271
      %v1275 = vsel %vm516, %v1271, %v1273
      %v1277 = vsel %vm331, %v1250, 0
      %v1280 = vsel %vm335, %v1274, 0
      %v1283 = vsel %vm335, %v1275, 0
      %1285 = vmatprep.subr.bf16.mxu0 %v1283
      %1286 = vmatpush1.bf16.msra.mxu0 %v1280
      %1287 = vmatprep.subr.bf16.mxu0 0
      %1288 = vmatpush1.bf16.msra.mxu0 0
      %1289 = vmatprep.subr.bf16.mxu0 0
      %1290 = vmatpush1.bf16.msra.mxu0 0
      %1291 = vmatprep.subr.bf16.mxu0 0
      %1292 = vmatpush1.bf16.msra.mxu0 0
      %1293 = vmatprep.subr.bf16.mxu0 0
      %1294 = vmatpush1.bf16.msra.mxu0 0
      %1295 = vmatprep.subr.bf16.mxu0 0
      %1296 = vmatpush1.bf16.msra.mxu0 0
      %1297 = vmatprep.subr.bf16.mxu0 0
      %1298 = vmatpush1.bf16.msra.mxu0 0
      %1299 = vmatprep.subr.bf16.mxu0 0
      %1300 = vmatpush1.bf16.msra.mxu0 0
      %1301 = vmatprep.subr.bf16.mxu0 0
      %1302 = vmatpush1.bf16.msra.mxu0 0
      %1303 = vmatprep.subr.bf16.mxu0 0
      %1304 = vmatpush1.bf16.msra.mxu0 0
      %1305 = vmatprep.subr.bf16.mxu0 0
      %1306 = vmatpush1.bf16.msra.mxu0 0
      %1307 = vmatprep.subr.bf16.mxu0 0
      %1308 = vmatpush1.bf16.msra.mxu0 0
      %1309 = vmatprep.subr.bf16.mxu0 0
      %1310 = vmatpush1.bf16.msra.mxu0 0
      %1311 = vmatprep.subr.bf16.mxu0 0
      %1312 = vmatpush1.bf16.msra.mxu0 0
      %1313 = vmatprep.subr.bf16.mxu0 0
      %1314 = vmatpush1.bf16.msra.mxu0 0
      %1315 = vmatprep.subr.bf16.mxu0 0
      %1316 = vmatpush1.bf16.msra.mxu0 0
      %1317 = vmatprep.mubr.bf16.mxu0 0
      %1318 = vmatmul.mubr.bf16.gmra.mrb[0].mxu0 %v1277
      %v1319 = vpop.f32.mrb[0].mxu0
      %v1320 = vadd.f32 0.0, %v1319
      %v1321 = vpop.f32.mrb[0].mxu0
      %v1322 = vadd.f32 0.0, %v1321
      %v1323 = vpop.f32.mrb[0].mxu0
      %v1324 = vpop.f32.mrb[0].mxu0
      %1325 = vdwg.mxu0
      %v1326 = vadd.f32 %v1241, %v1320
      %v1327 = vadd.f32 %v1243, %v1322
      %v1328 = vld [vmem:[#allocation2] sm:$0x3f]
      %v1329 = vmul.bf16 %v1328, %v576
      %s1330 = scalar_lea.vmem %s2, 6
      %v1331 = vld [vmem:[%s1330] sm:$0x3]
      %v1333 = vcombine.high %v1329, %v1329
      %v1335 = vunpack.c.l.s4 1983009808
      %v1336 = vunpack.c.0.s8 %v1335
      %v1337 = vlaneseq
      %v1338 = vshrl.u32 %v1337, 7
      %v1339 = vsub.s32 %v1336, %v1338
      %v1340 = vrot.slane %v1329, %v1339
      %v1342 = vunpack.c.l.s4 1983009808
      %v1343 = vunpack.c.0.s8 %v1342
      %v1344 = vlaneseq
      %v1345 = vshrl.u32 %v1344, 7
      %v1346 = vsub.s32 %v1343, %v1345
      %v1347 = vrot.slane %v1333, %v1346
      %v1348 = vcombine.high %v1340, %v1340
      %1349 = vrot.lane.b32.xlu0 %v1340, 1
      %v1350 = vpop.permute.xlu0 %1349
      %1351 = vrot.lane.b32.xlu0 %v1348, 1
      %v1352 = vpop.permute.xlu0 %1351
      %1353 = vrot.lane.b32.xlu0 %v1347, 1
      %v1354 = vpop.permute.xlu0 %1353
      %v1355 = vsel %vm604, %v1350, %v1352
      %v1356 = vsel %vm604, %v1352, %v1354
      %v1358 = vsel %vm331, %v1331, 0
      %v1361 = vsel %vm335, %v1355, 0
      %v1364 = vsel %vm335, %v1356, 0
      %1366 = vmatprep.subr.bf16.mxu0 %v1364
      %1367 = vmatpush1.bf16.msra.mxu0 %v1361
      %1368 = vmatprep.subr.bf16.mxu0 0
      %1369 = vmatpush1.bf16.msra.mxu0 0
      %1370 = vmatprep.subr.bf16.mxu0 0
      %1371 = vmatpush1.bf16.msra.mxu0 0
      %1372 = vmatprep.subr.bf16.mxu0 0
      %1373 = vmatpush1.bf16.msra.mxu0 0
      %1374 = vmatprep.subr.bf16.mxu0 0
      %1375 = vmatpush1.bf16.msra.mxu0 0
      %1376 = vmatprep.subr.bf16.mxu0 0
      %1377 = vmatpush1.bf16.msra.mxu0 0
      %1378 = vmatprep.subr.bf16.mxu0 0
      %1379 = vmatpush1.bf16.msra.mxu0 0
      %1380 = vmatprep.subr.bf16.mxu0 0
      %1381 = vmatpush1.bf16.msra.mxu0 0
      %1382 = vmatprep.subr.bf16.mxu0 0
      %1383 = vmatpush1.bf16.msra.mxu0 0
      %1384 = vmatprep.subr.bf16.mxu0 0
      %1385 = vmatpush1.bf16.msra.mxu0 0
      %1386 = vmatprep.subr.bf16.mxu0 0
      %1387 = vmatpush1.bf16.msra.mxu0 0
      %1388 = vmatprep.subr.bf16.mxu0 0
      %1389 = vmatpush1.bf16.msra.mxu0 0
      %1390 = vmatprep.subr.bf16.mxu0 0
      %1391 = vmatpush1.bf16.msra.mxu0 0
      %1392 = vmatprep.subr.bf16.mxu0 0
      %1393 = vmatpush1.bf16.msra.mxu0 0
      %1394 = vmatprep.subr.bf16.mxu0 0
      %1395 = vmatpush1.bf16.msra.mxu0 0
      %1396 = vmatprep.subr.bf16.mxu0 0
      %1397 = vmatpush1.bf16.msra.mxu0 0
      %1398 = vmatprep.mubr.bf16.mxu0 0
      %1399 = vmatmul.mubr.bf16.gmra.mrb[0].mxu0 %v1358
      %v1400 = vpop.f32.mrb[0].mxu0
      %v1401 = vadd.f32 0.0, %v1400
      %v1402 = vpop.f32.mrb[0].mxu0
      %v1403 = vadd.f32 0.0, %v1402
      %v1404 = vpop.f32.mrb[0].mxu0
      %v1405 = vpop.f32.mrb[0].mxu0
      %1406 = vdwg.mxu0
      %v1407 = vadd.f32 %v1326, %v1401
      %v1408 = vadd.f32 %v1327, %v1403
      %v1409 = vld [vmem:[#allocation2 + $0x2] sm:$0xf]
      %s1410 = scalar_lea.vmem %s2, 8
      %v1411 = vld [vmem:[%s1410] sm:$0x3]
      %v1414 = vunpack.c.l.s4 1983009808
      %v1415 = vunpack.c.0.s8 %v1414
      %v1416 = vlaneseq
      %v1417 = vshrl.u32 %v1416, 7
      %v1418 = vsub.s32 %v1415, %v1417
      %v1419 = vrot.slane %v1409, %v1418
      %v1420 = vcombine.high %v1419, %v1419
      %v1422 = vsel %vm331, %v1411, 0
      %v1425 = vsel %vm335, %v1419, 0
      %v1428 = vsel %vm335, %v1420, 0
      %1430 = vmatprep.subr.bf16.mxu0 %v1428
      %1431 = vmatpush1.bf16.msra.mxu0 %v1425
      %1432 = vmatprep.subr.bf16.mxu0 0
      %1433 = vmatpush1.bf16.msra.mxu0 0
      %1434 = vmatprep.subr.bf16.mxu0 0
      %1435 = vmatpush1.bf16.msra.mxu0 0
      %1436 = vmatprep.subr.bf16.mxu0 0
      %1437 = vmatpush1.bf16.msra.mxu0 0
      %1438 = vmatprep.subr.bf16.mxu0 0
      %1439 = vmatpush1.bf16.msra.mxu0 0
      %1440 = vmatprep.subr.bf16.mxu0 0
      %1441 = vmatpush1.bf16.msra.mxu0 0
      %1442 = vmatprep.subr.bf16.mxu0 0
      %1443 = vmatpush1.bf16.msra.mxu0 0
      %1444 = vmatprep.subr.bf16.mxu0 0
      %1445 = vmatpush1.bf16.msra.mxu0 0
      %1446 = vmatprep.subr.bf16.mxu0 0
      %1447 = vmatpush1.bf16.msra.mxu0 0
      %1448 = vmatprep.subr.bf16.mxu0 0
      %1449 = vmatpush1.bf16.msra.mxu0 0
      %1450 = vmatprep.subr.bf16.mxu0 0
      %1451 = vmatpush1.bf16.msra.mxu0 0
      %1452 = vmatprep.subr.bf16.mxu0 0
      %1453 = vmatpush1.bf16.msra.mxu0 0
      %1454 = vmatprep.subr.bf16.mxu0 0
      %1455 = vmatpush1.bf16.msra.mxu0 0
      %1456 = vmatprep.subr.bf16.mxu0 0
      %1457 = vmatpush1.bf16.msra.mxu0 0
      %1458 = vmatprep.subr.bf16.mxu0 0
      %1459 = vmatpush1.bf16.msra.mxu0 0
      %1460 = vmatprep.subr.bf16.mxu0 0
      %1461 = vmatpush1.bf16.msra.mxu0 0
      %1462 = vmatprep.mubr.bf16.mxu0 0
      %1463 = vmatmul.mubr.bf16.gmra.mrb[0].mxu0 %v1422
      %v1464 = vpop.f32.mrb[0].mxu0
      %v1465 = vadd.f32 0.0, %v1464
      %v1466 = vpop.f32.mrb[0].mxu0
      %v1467 = vadd.f32 0.0, %v1466
      %v1468 = vpop.f32.mrb[0].mxu0
      %v1469 = vpop.f32.mrb[0].mxu0
      %1470 = vdwg.mxu0
      %v1471 = vadd.f32 %v1407, %v1465
      %v1472 = vadd.f32 %v1408, %v1467
      %v1473 = vld [vmem:[#allocation2 + $0x2] sm:$0x3f]
      %v1474 = vmul.bf16 %v1473, %v727
      %s1475 = scalar_lea.vmem %s2, 10
      %v1476 = vld [vmem:[%s1475] sm:$0x3]
      %v1478 = vcombine.high %v1474, %v1474
      %v1480 = vunpack.c.l.s4 1983009808
      %v1481 = vunpack.c.0.s8 %v1480
      %v1482 = vlaneseq
      %v1483 = vshrl.u32 %v1482, 7
      %v1484 = vsub.s32 %v1481, %v1483
      %v1485 = vrot.slane %v1474, %v1484
      %v1487 = vunpack.c.l.s4 1983009808
      %v1488 = vunpack.c.0.s8 %v1487
      %v1489 = vlaneseq
      %v1490 = vshrl.u32 %v1489, 7
      %v1491 = vsub.s32 %v1488, %v1490
      %v1492 = vrot.slane %v1478, %v1491
      %v1493 = vcombine.high %v1485, %v1485
      %1494 = vrot.lane.b32.xlu0 %v1485, 127
      %v1495 = vpop.permute.xlu0 %1494
      %1496 = vrot.lane.b32.xlu0 %v1493, 127
      %v1497 = vpop.permute.xlu0 %1496
      %1498 = vrot.lane.b32.xlu0 %v1492, 127
      %v1499 = vpop.permute.xlu0 %1498
      %v1500 = vsel %vm575, %v1495, %v1497
      %v1501 = vsel %vm575, %v1497, %v1499
      %v1503 = vsel %vm331, %v1476, 0
      %v1506 = vsel %vm335, %v1500, 0
      %v1509 = vsel %vm335, %v1501, 0
      %1511 = vmatprep.subr.bf16.mxu0 %v1509
      %1512 = vmatpush1.bf16.msra.mxu0 %v1506
      %1513 = vmatprep.subr.bf16.mxu0 0
      %1514 = vmatpush1.bf16.msra.mxu0 0
      %1515 = vmatprep.subr.bf16.mxu0 0
      %1516 = vmatpush1.bf16.msra.mxu0 0
      %1517 = vmatprep.subr.bf16.mxu0 0
      %1518 = vmatpush1.bf16.msra.mxu0 0
      %1519 = vmatprep.subr.bf16.mxu0 0
      %1520 = vmatpush1.bf16.msra.mxu0 0
      %1521 = vmatprep.subr.bf16.mxu0 0
      %1522 = vmatpush1.bf16.msra.mxu0 0
      %1523 = vmatprep.subr.bf16.mxu0 0
      %1524 = vmatpush1.bf16.msra.mxu0 0
      %1525 = vmatprep.subr.bf16.mxu0 0
      %1526 = vmatpush1.bf16.msra.mxu0 0
      %1527 = vmatprep.subr.bf16.mxu0 0
      %1528 = vmatpush1.bf16.msra.mxu0 0
      %1529 = vmatprep.subr.bf16.mxu0 0
      %1530 = vmatpush1.bf16.msra.mxu0 0
      %1531 = vmatprep.subr.bf16.mxu0 0
      %1532 = vmatpush1.bf16.msra.mxu0 0
      %1533 = vmatprep.subr.bf16.mxu0 0
      %1534 = vmatpush1.bf16.msra.mxu0 0
      %1535 = vmatprep.subr.bf16.mxu0 0
      %1536 = vmatpush1.bf16.msra.mxu0 0
      %1537 = vmatprep.subr.bf16.mxu0 0
      %1538 = vmatpush1.bf16.msra.mxu0 0
      %1539 = vmatprep.subr.bf16.mxu0 0
      %1540 = vmatpush1.bf16.msra.mxu0 0
      %1541 = vmatprep.subr.bf16.mxu0 0
      %1542 = vmatpush1.bf16.msra.mxu0 0
      %1543 = vmatprep.mubr.bf16.mxu0 0
      %1544 = vmatmul.mubr.bf16.gmra.mrb[0].mxu0 %v1503
      %v1545 = vpop.f32.mrb[0].mxu0
      %v1546 = vadd.f32 0.0, %v1545
      %v1547 = vpop.f32.mrb[0].mxu0
      %v1548 = vadd.f32 0.0, %v1547
      %v1549 = vpop.f32.mrb[0].mxu0
      %v1550 = vpop.f32.mrb[0].mxu0
      %1551 = vdwg.mxu0
      %v1552 = vadd.f32 %v1471, %v1546
      %v1553 = vadd.f32 %v1472, %v1548
      %v1554 = vld [vmem:[#allocation2 + $0x2] sm:$0x3f]
      %v1555 = vmul.bf16 %v1554, %v813
      %s1556 = scalar_lea.vmem %s2, 12
      %v1557 = vld [vmem:[%s1556] sm:$0x3]
      %v1559 = vcombine.high %v1555, %v1555
      %v1561 = vunpack.c.l.s4 1983009808
      %v1562 = vunpack.c.0.s8 %v1561
      %v1563 = vlaneseq
      %v1564 = vshrl.u32 %v1563, 7
      %v1565 = vsub.s32 %v1562, %v1564
      %v1566 = vrot.slane %v1555, %v1565
      %v1568 = vunpack.c.l.s4 1983009808
      %v1569 = vunpack.c.0.s8 %v1568
      %v1570 = vlaneseq
      %v1571 = vshrl.u32 %v1570, 7
      %v1572 = vsub.s32 %v1569, %v1571
      %v1573 = vrot.slane %v1559, %v1572
      %v1574 = vcombine.high %v1566, %v1566
      %1575 = vrot.lane.b32.xlu0 %v1566, 113
      %v1576 = vpop.permute.xlu0 %1575
      %1577 = vrot.lane.b32.xlu0 %v1574, 113
      %v1578 = vpop.permute.xlu0 %1577
      %1579 = vrot.lane.b32.xlu0 %v1573, 113
      %v1580 = vpop.permute.xlu0 %1579
      %v1581 = vsel %vm487, %v1576, %v1578
      %v1582 = vsel %vm487, %v1578, %v1580
      %v1584 = vsel %vm331, %v1557, 0
      %v1587 = vsel %vm335, %v1581, 0
      %v1590 = vsel %vm335, %v1582, 0
      %1592 = vmatprep.subr.bf16.mxu0 %v1590
      %1593 = vmatpush1.bf16.msra.mxu0 %v1587
      %1594 = vmatprep.subr.bf16.mxu0 0
      %1595 = vmatpush1.bf16.msra.mxu0 0
      %1596 = vmatprep.subr.bf16.mxu0 0
      %1597 = vmatpush1.bf16.msra.mxu0 0
      %1598 = vmatprep.subr.bf16.mxu0 0
      %1599 = vmatpush1.bf16.msra.mxu0 0
      %1600 = vmatprep.subr.bf16.mxu0 0
      %1601 = vmatpush1.bf16.msra.mxu0 0
      %1602 = vmatprep.subr.bf16.mxu0 0
      %1603 = vmatpush1.bf16.msra.mxu0 0
      %1604 = vmatprep.subr.bf16.mxu0 0
      %1605 = vmatpush1.bf16.msra.mxu0 0
      %1606 = vmatprep.subr.bf16.mxu0 0
      %1607 = vmatpush1.bf16.msra.mxu0 0
      %1608 = vmatprep.subr.bf16.mxu0 0
      %1609 = vmatpush1.bf16.msra.mxu0 0
      %1610 = vmatprep.subr.bf16.mxu0 0
      %1611 = vmatpush1.bf16.msra.mxu0 0
      %1612 = vmatprep.subr.bf16.mxu0 0
      %1613 = vmatpush1.bf16.msra.mxu0 0
      %1614 = vmatprep.subr.bf16.mxu0 0
      %1615 = vmatpush1.bf16.msra.mxu0 0
      %1616 = vmatprep.subr.bf16.mxu0 0
      %1617 = vmatpush1.bf16.msra.mxu0 0
      %1618 = vmatprep.subr.bf16.mxu0 0
      %1619 = vmatpush1.bf16.msra.mxu0 0
      %1620 = vmatprep.subr.bf16.mxu0 0
      %1621 = vmatpush1.bf16.msra.mxu0 0
      %1622 = vmatprep.subr.bf16.mxu0 0
      %1623 = vmatpush1.bf16.msra.mxu0 0
      %1624 = vmatprep.mubr.bf16.mxu0 0
      %1625 = vmatmul.mubr.bf16.gmra.mrb[0].mxu0 %v1584
      %v1626 = vpop.f32.mrb[0].mxu0
      %v1627 = vadd.f32 0.0, %v1626
      %v1628 = vpop.f32.mrb[0].mxu0
      %v1629 = vadd.f32 0.0, %v1628
      %v1630 = vpop.f32.mrb[0].mxu0
      %v1631 = vpop.f32.mrb[0].mxu0
      %1632 = vdwg.mxu0
      %v1633 = vadd.f32 %v1552, %v1627
      %v1634 = vadd.f32 %v1553, %v1629
      %v1635 = vld [vmem:[#allocation2 + $0x2] sm:$0x3f]
      %s1636 = scalar_lea.vmem %s2, 14
      %v1637 = vld [vmem:[%s1636] sm:$0x3]
      %v1639 = vcombine.high %v1635, %v1635
      %v1641 = vunpack.c.l.s4 1983009808
      %v1642 = vunpack.c.0.s8 %v1641
      %v1643 = vlaneseq
      %v1644 = vshrl.u32 %v1643, 7
      %v1645 = vsub.s32 %v1642, %v1644
      %v1646 = vrot.slane %v1635, %v1645
      %v1648 = vunpack.c.l.s4 1983009808
      %v1649 = vunpack.c.0.s8 %v1648
      %v1650 = vlaneseq
      %v1651 = vshrl.u32 %v1650, 7
      %v1652 = vsub.s32 %v1649, %v1651
      %v1653 = vrot.slane %v1639, %v1652
      %v1654 = vcombine.high %v1646, %v1646
      %1655 = vrot.lane.b32.xlu0 %v1646, 112
      %v1656 = vpop.permute.xlu0 %1655
      %1657 = vrot.lane.b32.xlu0 %v1654, 112
      %v1658 = vpop.permute.xlu0 %1657
      %1659 = vrot.lane.b32.xlu0 %v1653, 112
      %v1660 = vpop.permute.xlu0 %1659
      %v1661 = vsel %vm921, %v1656, %v1658
      %v1662 = vsel %vm921, %v1658, %v1660
      %v1664 = vsel %vm331, %v1637, 0
      %v1667 = vsel %vm335, %v1661, 0
      %v1670 = vsel %vm335, %v1662, 0
      %1672 = vmatprep.subr.bf16.mxu0 %v1670
      %1673 = vmatpush1.bf16.msra.mxu0 %v1667
      %1674 = vmatprep.subr.bf16.mxu0 0
      %1675 = vmatpush1.bf16.msra.mxu0 0
      %1676 = vmatprep.subr.bf16.mxu0 0
      %1677 = vmatpush1.bf16.msra.mxu0 0
      %1678 = vmatprep.subr.bf16.mxu0 0
      %1679 = vmatpush1.bf16.msra.mxu0 0
      %1680 = vmatprep.subr.bf16.mxu0 0
      %1681 = vmatpush1.bf16.msra.mxu0 0
      %1682 = vmatprep.subr.bf16.mxu0 0
      %1683 = vmatpush1.bf16.msra.mxu0 0
      %1684 = vmatprep.subr.bf16.mxu0 0
      %1685 = vmatpush1.bf16.msra.mxu0 0
      %1686 = vmatprep.subr.bf16.mxu0 0
      %1687 = vmatpush1.bf16.msra.mxu0 0
      %1688 = vmatprep.subr.bf16.mxu0 0
      %1689 = vmatpush1.bf16.msra.mxu0 0
      %1690 = vmatprep.subr.bf16.mxu0 0
      %1691 = vmatpush1.bf16.msra.mxu0 0
      %1692 = vmatprep.subr.bf16.mxu0 0
      %1693 = vmatpush1.bf16.msra.mxu0 0
      %1694 = vmatprep.subr.bf16.mxu0 0
      %1695 = vmatpush1.bf16.msra.mxu0 0
      %1696 = vmatprep.subr.bf16.mxu0 0
      %1697 = vmatpush1.bf16.msra.mxu0 0
      %1698 = vmatprep.subr.bf16.mxu0 0
      %1699 = vmatpush1.bf16.msra.mxu0 0
      %1700 = vmatprep.subr.bf16.mxu0 0
      %1701 = vmatpush1.bf16.msra.mxu0 0
      %1702 = vmatprep.subr.bf16.mxu0 0
      %1703 = vmatpush1.bf16.msra.mxu0 0
      %1704 = vmatprep.mubr.bf16.mxu0 0
      %1705 = vmatmul.mubr.bf16.gmra.mrb[0].mxu0 %v1664
      %v1706 = vpop.f32.mrb[0].mxu0
      %v1707 = vadd.f32 0.0, %v1706
      %v1708 = vpop.f32.mrb[0].mxu0
      %v1709 = vadd.f32 0.0, %v1708
      %v1710 = vpop.f32.mrb[0].mxu0
      %v1711 = vpop.f32.mrb[0].mxu0
      %1712 = vdwg.mxu0
      %v1713 = vadd.f32 %v1633, %v1707
      %v1714 = vadd.f32 %v1634, %v1709
      %v1715 = vld [vmem:[#allocation2 + $0x2] sm:$0x3f]
      %v1716 = vmul.bf16 %v1715, %v980
      %s1717 = scalar_lea.vmem %s2, 16
      %v1718 = vld [vmem:[%s1717] sm:$0x3]
      %v1720 = vcombine.high %v1716, %v1716
      %v1722 = vunpack.c.l.s4 1983009808
      %v1723 = vunpack.c.0.s8 %v1722
      %v1724 = vlaneseq
      %v1725 = vshrl.u32 %v1724, 7
      %v1726 = vsub.s32 %v1723, %v1725
      %v1727 = vrot.slane %v1716, %v1726
      %v1729 = vunpack.c.l.s4 1983009808
      %v1730 = vunpack.c.0.s8 %v1729
      %v1731 = vlaneseq
      %v1732 = vshrl.u32 %v1731, 7
      %v1733 = vsub.s32 %v1730, %v1732
      %v1734 = vrot.slane %v1720, %v1733
      %v1735 = vcombine.high %v1727, %v1727
      %1736 = vrot.lane.b32.xlu0 %v1727, 111
      %v1737 = vpop.permute.xlu0 %1736
      %1738 = vrot.lane.b32.xlu0 %v1735, 111
      %v1739 = vpop.permute.xlu0 %1738
      %1740 = vrot.lane.b32.xlu0 %v1734, 111
      %v1741 = vpop.permute.xlu0 %1740
      %v1742 = vsel %vm298, %v1737, %v1739
      %v1743 = vsel %vm298, %v1739, %v1741
      %v1745 = vsel %vm331, %v1718, 0
      %v1748 = vsel %vm335, %v1742, 0
      %v1751 = vsel %vm335, %v1743, 0
      %1753 = vmatprep.subr.bf16.mxu0 %v1751
      %1754 = vmatpush1.bf16.msra.mxu0 %v1748
      %1755 = vmatprep.subr.bf16.mxu0 0
      %1756 = vmatpush1.bf16.msra.mxu0 0
      %1757 = vmatprep.subr.bf16.mxu0 0
      %1758 = vmatpush1.bf16.msra.mxu0 0
      %1759 = vmatprep.subr.bf16.mxu0 0
      %1760 = vmatpush1.bf16.msra.mxu0 0
      %1761 = vmatprep.subr.bf16.mxu0 0
      %1762 = vmatpush1.bf16.msra.mxu0 0
      %1763 = vmatprep.subr.bf16.mxu0 0
      %1764 = vmatpush1.bf16.msra.mxu0 0
      %1765 = vmatprep.subr.bf16.mxu0 0
      %1766 = vmatpush1.bf16.msra.mxu0 0
      %1767 = vmatprep.subr.bf16.mxu0 0
      %1768 = vmatpush1.bf16.msra.mxu0 0
      %1769 = vmatprep.subr.bf16.mxu0 0
      %1770 = vmatpush1.bf16.msra.mxu0 0
      %1771 = vmatprep.subr.bf16.mxu0 0
      %1772 = vmatpush1.bf16.msra.mxu0 0
      %1773 = vmatprep.subr.bf16.mxu0 0
      %1774 = vmatpush1.bf16.msra.mxu0 0
      %1775 = vmatprep.subr.bf16.mxu0 0
      %1776 = vmatpush1.bf16.msra.mxu0 0
      %1777 = vmatprep.subr.bf16.mxu0 0
      %1778 = vmatpush1.bf16.msra.mxu0 0
      %1779 = vmatprep.subr.bf16.mxu0 0
      %1780 = vmatpush1.bf16.msra.mxu0 0
      %1781 = vmatprep.subr.bf16.mxu0 0
      %1782 = vmatpush1.bf16.msra.mxu0 0
      %1783 = vmatprep.subr.bf16.mxu0 0
      %1784 = vmatpush1.bf16.msra.mxu0 0
      %1785 = vmatprep.mubr.bf16.mxu0 0
      %1786 = vmatmul.mubr.bf16.gmra.mrb[0].mxu0 %v1745
      %v1787 = vpop.f32.mrb[0].mxu0
      %v1788 = vadd.f32 0.0, %v1787
      %v1789 = vpop.f32.mrb[0].mxu0
      %v1790 = vadd.f32 0.0, %v1789
      %v1791 = vpop.f32.mrb[0].mxu0
      %v1792 = vpop.f32.mrb[0].mxu0
      %1793 = vdwg.mxu0
      %v1794 = vadd.f32 %v1713, %v1788
      %v1795 = vadd.f32 %v1714, %v1790
      %v1796 = vld [vmem:[%s3] sm:$0xf]
      %1798 = vset.pattern.permute.xlu0 2
      %1799 = vperm.xlu0 %1798, %v1796
      %v1800 = vpop.permute.xlu0 %1799
      %v1802 = vmul.f32 %v1794, %v1800
      %v1803 = vmul.f32 %v1795, %v1800
      %1804 = vset.pattern.permute.xlu0 3
      %1805 = vperm.xlu0 %1804, %v1796
      %v1806 = vpop.permute.xlu0 %1805
      %v1808 = vadd.f32 %v1802, %v1806
      %v1809 = vadd.f32 %v1803, %v1806
      %v1810 = vadd.f32 %v1808, %v229
      %v1811 = vadd.f32 %v1809, %v231
      %v1812 = vmax.f32 %v1810, 0.0
      %v1813 = vmax.f32 %v1811, 0.0
      %v1816 = vcombine.low %v1812, %v1813
      %1818 = vst [vmem:[%s224] sm:$0xff] %v1816
      %p1819 = scmp.lt.s32.totalorder %s16, 1
      %s1820 = scalar_select %p1819, %s16, 1
      %s1821 = smul.addr %s1820, 2
      %s1822 = smul.addr %s1821, 4
      %s1823 = scalar_lea.vmem %s5, %s1822
      // Predicated region
      $region41: #{basic_block_q_forward.1} parent=39 // pred_check
        %p1824 = pneg %p144
      $region42: #{basic_block_q_forward.1} parent=39 // pred_check_branch
        %1826 = sbr.rel (%p1824) target = $region44
      $region43: #{basic_block_q_forward.1} parent=39 // pred_region
        _
      $region44: #{basic_block_q_forward.1} parent=39 // pred_fallthru
        _
    $region40: #{basic_block_q_forward.1} parent=5 // pred_fallthru
      _
    %p1827 = scmp.le.s32.totalorder 2, %s11
    // Predicated region
    $region45: #{basic_block_q_forward.1} parent=5 // pred_check
      %p1828 = pneg %p1827
    $region46: #{basic_block_q_forward.1} parent=5 // pred_check_branch
      %1830 = sbr.rel (%p1828) target = $region48
    $region47: #{basic_block_q_forward.1} parent=5 // pred_region
      %s1831 = ssub.s32 %s11, 2
      // Predicated region
      $region49: #{basic_block_q_forward.1} parent=47 // pred_check
        %p1832 = pneg %p150
      $region50: #{basic_block_q_forward.1} parent=47 // pred_check_branch
        %1834 = sbr.rel (%p1832) target = $region52
      $region51: #{basic_block_q_forward.1} parent=47 // pred_region
        %p1835 = scmp.lt.s32.totalorder %s17, 1
        %s1836 = scalar_select %p1835, %s17, 1
        %s1837 = smul.addr %s1836, 2
        %s1838 = smul.addr %s1837, 4
        %s1839 = scalar_lea.vmem %s5, %s1838
      $region52: #{basic_block_q_forward.1} parent=47 // pred_fallthru
        _
    $region48: #{basic_block_q_forward.1} parent=5 // pred_fallthru
      _
  $region6: #{basic_block_q_forward.1} parent=0 // loop_footer
    %s15 = sadd.s32 1, %s11
  $region7: #{basic_block_q_forward.1} parent=0 // loop_footer_branch
    %10 = sbr.rel target = $region3
  $region8: #{basic_block_q_forward.1} parent=0 // loop_exit
    _

</llo_original>
